<compile_context>
chip_gen: v6e
topology: v6e:2x2x1
jax: 0.10.0
libtpu: 0.0.40
codegen_flags: <defaults>
</compile_context>

<pallas_src>
import math
import numpy as np
import jax
import jax.numpy as jnp
from jax import lax
from jax.experimental import pallas as pl
from jax.experimental.pallas import tpu as pltpu  # noqa: F401

# ---- small config consistent with the module ----
B = 2                        # batch
S = 8                        # seq len (q_len == kv_len, empty cache)
H = 32                       # hidden_size
NUM_HEADS = 4                # heads_per_node[rank]
NUM_KV_HEADS = 2             # kv_heads_per_node[rank]
HEAD_DIM = H // NUM_HEADS    # 8
N_REP = NUM_HEADS // NUM_KV_HEADS
INTER = 64                   # intermediate_size (world_size=1 -> split_dim == intermediate_size)
EPS = 1e-6                   # rms_norm_eps
SCALE = 1.0 / math.sqrt(HEAD_DIM)
QW = NUM_HEADS * HEAD_DIM    # 32 (q width == repeated k/v width)


def decoder_layer_kernel(x_ref, wqkv_ref, wo_ref, wgu_ref, wd_ref,
                         cos_ref, sin_ref, o_ref):
    x = x_ref[...]                                            # (B*S, H), f32

    # ---- input_layernorm (gamma folded into wqkv host-side) ----
    inv1 = lax.rsqrt(jnp.mean(x * x, axis=-1, keepdims=True) + EPS)
    h = x * inv1

    # ---- fused [q | k_rep | rot(q) | rot(k_rep) | v_rep] projection: one MXU launch ----
    qkv = jnp.dot(h, wqkv_ref[...], preferred_element_type=jnp.float32)  # (B*S, 5*QW)

    # RoPE for q and k in one wide FMA (cos/sin tables pre-tiled to (B*S, 2*QW)).
    qk = qkv[:, 0:2 * QW] * cos_ref[...] + qkv[:, 2 * QW:4 * QW] * sin_ref[...]
    q = qk[:, :QW]                                            # RoPE(q), scale pre-folded
    k = qk[:, QW:]                                            # RoPE(repeat_kv(k))
    v = qkv[:, 4 * QW:5 * QW]                                 # repeat_kv(v)

    # ---- causal additive mask built in-kernel (no HBM mask input) ----
    row = lax.broadcasted_iota(jnp.int32, (S, S), 0)
    col = lax.broadcasted_iota(jnp.int32, (S, S), 1)
    neg = jnp.where(col > row, -1e30, 0.0).astype(jnp.float32)  # (S, S)

    q3 = q.reshape(B, S, QW)
    k3 = k.reshape(B, S, QW)
    v3 = v.reshape(B, S, QW)

    # ---- attention: batch handled by the einsum batch dim, 4-way static head loop ----
    heads = []
    for hh in range(NUM_HEADS):
        sl = slice(hh * HEAD_DIM, (hh + 1) * HEAD_DIM)
        s = jnp.einsum('bqd,bkd->bqk', q3[:, :, sl], k3[:, :, sl],
                       preferred_element_type=jnp.float32) + neg[None]
        s = s - jnp.max(s, axis=-1, keepdims=True)
        p = jnp.exp(s)
        p = p * pl.reciprocal(jnp.sum(p, axis=-1, keepdims=True), approx=True)
        heads.append(jnp.einsum('bqk,bkd->bqd', p, v3[:, :, sl],
                                preferred_element_type=jnp.float32))
    attn = jnp.concatenate(heads, axis=-1).reshape(B * S, QW)   # (B*S, NH*HD)

    attn_out = jnp.dot(attn, wo_ref[...], preferred_element_type=jnp.float32)
    # TODO(synk): comm.all_reduce is a cross-host collective; identity at world_size=1.
    h1 = x + attn_out                                           # residual add

    # ---- post_attention_layernorm (gamma folded into wgu) + SwiGLU MLP ----
    inv2 = lax.rsqrt(jnp.mean(h1 * h1, axis=-1, keepdims=True) + EPS)
    h2 = h1 * inv2
    gu = jnp.dot(h2, wgu_ref[...], preferred_element_type=jnp.float32)   # (B*S, 2*INTER)
    g = gu[:, :INTER]
    u = gu[:, INTER:]
    act = g * pl.reciprocal(1.0 + jnp.exp(-g), approx=True)              # SiLU via EUP
    mlp = jnp.dot(act * u, wd_ref[...], preferred_element_type=jnp.float32)

    o_ref[...] = (h1 + mlp).astype(o_ref.dtype)                 # residual add


def pack_params(params, cos, sin):
    """One-time host-side weight packing (would be done once at model load)."""
    ln1, ln2, wq, wk, wv, wo, wg, wu, wd = params
    half = HEAD_DIM // 2

    # rotate_half as a matmul: t @ r == concat(-t2, t1); block-diagonal per head.
    r = np.zeros((HEAD_DIM, HEAD_DIM), np.float32)
    for i in range(half):
        r[i, i + half] = 1.0
        r[i + half, i] = -1.0
    r_full = jnp.asarray(np.kron(np.eye(NUM_HEADS, dtype=np.float32), r))  # (QW, QW)

    def expand_kv(w):  # fold GQA repeat_kv into the projection weight: (H, NKV*HD) -> (H, NH*HD)
        w = w.reshape(H, NUM_KV_HEADS, HEAD_DIM)
        return jnp.repeat(w, N_REP, axis=1).reshape(H, QW)

    wq_s = wq * SCALE                      # fold 1/sqrt(head_dim) into q projection
    wk_r = expand_kv(wk)
    wv_r = expand_kv(wv)
    # Column order [q | k | rot(q) | rot(k) | v] lets RoPE for q and k run as ONE FMA.
    w_qkv = jnp.concatenate([wq_s, wk_r, wq_s @ r_full, wk_r @ r_full, wv_r], axis=1)
    w_qkv = ln1[:, None] * w_qkv           # fold input_layernorm gamma        (H, 5*QW)
    w_gu = ln2[:, None] * jnp.concatenate([wg, wu], axis=1)  # post-attn gamma (H, 2*INTER)

    # RoPE tables broadcast per head, per {q,k}, per batch: (S, HD) -> (B*S, 2*QW)
    cos_qk = jnp.tile(jnp.tile(cos, (1, NUM_HEADS)), (B, 2))
    sin_qk = jnp.tile(jnp.tile(sin, (1, NUM_HEADS)), (B, 2))
    return (w_qkv.astype(jnp.float32), wo, w_gu.astype(jnp.float32), wd,
            cos_qk.astype(jnp.float32), sin_qk.astype(jnp.float32))


def decoder_layer(x, packed):
    w_qkv, w_o, w_gu, w_d, cos_qk, sin_qk = packed
    x2 = x.reshape(B * S, H)
    # Single invocation: no grid, every (tiny) operand mapped whole into VMEM.
    out = pl.pallas_call(
        decoder_layer_kernel,
        out_shape=jax.ShapeDtypeStruct((B * S, H), jnp.float32),
    )(x2, w_qkv, w_o, w_gu, w_d, cos_qk, sin_qk)
    return out.reshape(B, S, H)


# ---- pure-JAX reference of the same forward pass (faithful to the torch module) ----
def reference(x, params, cos, sin):
    ln1, ln2, wq, wk, wv, wo, wg, wu, wd = params

    def rms(t, w):
        var = jnp.mean(t * t, -1, keepdims=True)
        return t * lax.rsqrt(var + EPS) * w

    def rot(t):
        t1, t2 = t[..., :HEAD_DIM // 2], t[..., HEAD_DIM // 2:]
        return jnp.concatenate([-t2, t1], -1)

    h = rms(x, ln1)
    q = (h @ wq).reshape(B, S, NUM_HEADS, HEAD_DIM).transpose(0, 2, 1, 3)
    k = (h @ wk).reshape(B, S, NUM_KV_HEADS, HEAD_DIM).transpose(0, 2, 1, 3)
    v = (h @ wv).reshape(B, S, NUM_KV_HEADS, HEAD_DIM).transpose(0, 2, 1, 3)
    c4, s4 = cos[None, None], sin[None, None]
    q = q * c4 + rot(q) * s4
    k = k * c4 + rot(k) * s4
    k = jnp.repeat(k, N_REP, axis=1)
    v = jnp.repeat(v, N_REP, axis=1)
    idx = jnp.arange(S)
    mask = jnp.where(idx[None, :] > idx[:, None], -1e30, 0.0).astype(jnp.float32)
    s = jnp.einsum('bhqd,bhkd->bhqk', q, k) * SCALE + mask[None, None]
    p = jax.nn.softmax(s, -1)
    o = jnp.einsum('bhqk,bhkd->bhqd', p, v).transpose(0, 2, 1, 3).reshape(B, S, -1)
    h1 = x + o @ wo
    h2 = rms(h1, ln2)
    mlp = (jax.nn.silu(h2 @ wg) * (h2 @ wu)) @ wd
    return h1 + mlp


if __name__ == "__main__":
    key = jax.random.PRNGKey(0)
    ks = jax.random.split(key, 10)

    x = jax.random.normal(ks[0], (B, S, H), jnp.float32)
    ln1 = (1.0 + 0.1 * jax.random.normal(ks[1], (H,))).astype(jnp.float32)
    ln2 = (1.0 + 0.1 * jax.random.normal(ks[2], (H,))).astype(jnp.float32)

    def init(k, shp):
        return (0.05 * jax.random.normal(k, shp)).astype(jnp.float32)

    wq = init(ks[3], (H, NUM_HEADS * HEAD_DIM))
    wk = init(ks[4], (H, NUM_KV_HEADS * HEAD_DIM))
    wv = init(ks[5], (H, NUM_KV_HEADS * HEAD_DIM))
    wo = init(ks[6], (NUM_HEADS * HEAD_DIM, H))
    wg = init(ks[7], (H, INTER))
    wu = init(ks[8], (H, INTER))
    wd = init(ks[9], (INTER, H))

    # RoPE tables (position_embeddings), shared across batch
    inv_freq = 1.0 / (10000.0 ** (jnp.arange(0, HEAD_DIM, 2, dtype=jnp.float32) / HEAD_DIM))
    pos = jnp.arange(S, dtype=jnp.float32)
    freqs = pos[:, None] * inv_freq[None, :]
    emb = jnp.concatenate([freqs, freqs], axis=-1)            # (S, HD)
    cos, sin = jnp.cos(emb), jnp.sin(emb)

    params = (ln1, ln2, wq, wk, wv, wo, wg, wu, wd)
    packed = pack_params(params, cos, sin)

    out = decoder_layer(x, packed)
    jax.block_until_ready(out)

    ref = reference(x, params, cos, sin)
    # Tolerance loosened from 1e-4: softmax/SiLU denominators use the EUP approximate
    # reciprocal (pl.reciprocal(approx=True)); any structural bug would be O(1).
    np.testing.assert_allclose(np.asarray(out), np.asarray(ref), rtol=1e-2, atol=1e-2)

    print("KERNEL_OK")
</pallas_src>

<mosaic_0001>
module attributes {stable_mosaic.version = 11 : i64} {
  func.func @decoder_layer_kernel(%arg0: memref<16x32xf32, #tpu.memory_space<vmem>>, %arg1: memref<32x160xf32, #tpu.memory_space<vmem>>, %arg2: memref<32x32xf32, #tpu.memory_space<vmem>>, %arg3: memref<32x128xf32, #tpu.memory_space<vmem>>, %arg4: memref<64x32xf32, #tpu.memory_space<vmem>>, %arg5: memref<16x64xf32, #tpu.memory_space<vmem>>, %arg6: memref<16x64xf32, #tpu.memory_space<vmem>>, %arg7: memref<16x32xf32, #tpu.memory_space<vmem>>) attributes {dimension_semantics = [], scalar_prefetch = 0 : i64, scratch_operands = 0 : i64, tpu.core_type = #tpu.core_type<tc>} {
    %c0 = arith.constant 0 : index
    %c0_0 = arith.constant 0 : index
    %0 = vector.load %arg0[%c0, %c0_0] : memref<16x32xf32, #tpu.memory_space<vmem>>, vector<16x32xf32>
    %1 = arith.mulf %0, %0 : vector<16x32xf32>
    %cst = arith.constant dense<0.000000e+00> : vector<16xf32>
    %2 = vector.multi_reduction <add>, %1, %cst [1] : vector<16x32xf32> to vector<16xf32>
    %3 = vector.shape_cast %2 : vector<16xf32> to vector<16x1xf32>
    %cst_1 = arith.constant 3.200000e+01 : f32
    %4 = vector.broadcast %cst_1 : f32 to vector<16x1xf32>
    %5 = arith.divf %3, %4 : vector<16x1xf32>
    %cst_2 = arith.constant 9.99999997E-7 : f32
    %6 = vector.broadcast %cst_2 : f32 to vector<16x1xf32>
    %7 = arith.addf %5, %6 : vector<16x1xf32>
    %8 = math.rsqrt %7 : vector<16x1xf32>
    %9 = vector.broadcast %8 : vector<16x1xf32> to vector<16x32xf32>
    %10 = arith.mulf %0, %9 : vector<16x32xf32>
    %c0_3 = arith.constant 0 : index
    %c0_4 = arith.constant 0 : index
    %11 = vector.load %arg1[%c0_3, %c0_4] : memref<32x160xf32, #tpu.memory_space<vmem>>, vector<32x160xf32>
    %cst_5 = arith.constant dense<0.000000e+00> : vector<16x160xf32>
    %12 = tpu.matmul %10, %11, %cst_5 {dimension_numbers = #tpu.dot_dimension_numbers<[1], [0], [0], [1], [0, 0, 1, 1], [], []>} : vector<16x32xf32>, vector<32x160xf32>, vector<16x160xf32> -> vector<16x160xf32>
    %13 = vector.extract_strided_slice %12 {offsets = [0, 0], sizes = [16, 64], strides = [1, 1]} : vector<16x160xf32> to vector<16x64xf32>
    %c0_6 = arith.constant 0 : index
    %c0_7 = arith.constant 0 : index
    %14 = vector.load %arg5[%c0_6, %c0_7] : memref<16x64xf32, #tpu.memory_space<vmem>>, vector<16x64xf32>
    %15 = arith.mulf %13, %14 : vector<16x64xf32>
    %16 = vector.extract_strided_slice %12 {offsets = [0, 64], sizes = [16, 64], strides = [1, 1]} : vector<16x160xf32> to vector<16x64xf32>
    %c0_8 = arith.constant 0 : index
    %c0_9 = arith.constant 0 : index
    %17 = vector.load %arg6[%c0_8, %c0_9] : memref<16x64xf32, #tpu.memory_space<vmem>>, vector<16x64xf32>
    %18 = arith.mulf %16, %17 : vector<16x64xf32>
    %19 = arith.addf %15, %18 : vector<16x64xf32>
    %20 = vector.extract_strided_slice %19 {offsets = [0, 0], sizes = [16, 32], strides = [1, 1]} : vector<16x64xf32> to vector<16x32xf32>
    %21 = vector.extract_strided_slice %19 {offsets = [0, 32], sizes = [16, 32], strides = [1, 1]} : vector<16x64xf32> to vector<16x32xf32>
    %22 = vector.extract_strided_slice %12 {offsets = [0, 128], sizes = [16, 32], strides = [1, 1]} : vector<16x160xf32> to vector<16x32xf32>
    %23 = tpu.iota {dimensions = array<i32: 0>} : vector<8x8xi32>
    %24 = tpu.iota {dimensions = array<i32: 1>} : vector<8x8xi32>
    %25 = arith.cmpi sgt, %24, %23 : vector<8x8xi32>
    %cst_10 = arith.constant -1.000000e+30 : f32
    %cst_11 = arith.constant 0.000000e+00 : f32
    %26 = vector.broadcast %cst_10 : f32 to vector<8x8xf32>
    %27 = vector.broadcast %cst_11 : f32 to vector<8x8xf32>
    %28 = arith.select %25, %26, %27 : vector<8x8xi1>, vector<8x8xf32>
    %29 = vector.shape_cast %20 : vector<16x32xf32> to vector<2x8x32xf32>
    %30 = vector.shape_cast %21 : vector<16x32xf32> to vector<2x8x32xf32>
    %31 = vector.shape_cast %22 : vector<16x32xf32> to vector<2x8x32xf32>
    %32 = vector.extract_strided_slice %29 {offsets = [0, 0, 0], sizes = [2, 8, 8], strides = [1, 1, 1]} : vector<2x8x32xf32> to vector<2x8x8xf32>
    %33 = vector.extract_strided_slice %30 {offsets = [0, 0, 0], sizes = [2, 8, 8], strides = [1, 1, 1]} : vector<2x8x32xf32> to vector<2x8x8xf32>
    "tpu.trace_start"() <{level = 10 : i32, message = "bqd,bkd->bqk"}> : () -> ()
    %cst_12 = arith.constant dense<0.000000e+00> : vector<2x8x8xf32>
    %34 = tpu.matmul %32, %33, %cst_12 {dimension_numbers = #tpu.dot_dimension_numbers<[2], [2], [1], [1], [0, 0, 0, 1, 1, 1], [0], [0]>} : vector<2x8x8xf32>, vector<2x8x8xf32>, vector<2x8x8xf32> -> vector<2x8x8xf32>
    "tpu.trace_stop"() : () -> ()
    %35 = vector.shape_cast %28 : vector<8x8xf32> to vector<1x8x8xf32>
    %36 = vector.broadcast %35 : vector<1x8x8xf32> to vector<2x8x8xf32>
    %37 = arith.addf %34, %36 : vector<2x8x8xf32>
    %cst_13 = arith.constant dense<0xFF800000> : vector<2x8xf32>
    %38 = vector.multi_reduction <maximumf>, %37, %cst_13 [2] : vector<2x8x8xf32> to vector<2x8xf32>
    %39 = vector.shape_cast %38 : vector<2x8xf32> to vector<2x8x1xf32>
    %40 = vector.broadcast %39 : vector<2x8x1xf32> to vector<2x8x8xf32>
    %41 = arith.subf %37, %40 : vector<2x8x8xf32>
    %42 = math.exp %41 : vector<2x8x8xf32>
    %cst_14 = arith.constant dense<0.000000e+00> : vector<2x8xf32>
    %43 = vector.multi_reduction <add>, %42, %cst_14 [2] : vector<2x8x8xf32> to vector<2x8xf32>
    %44 = vector.shape_cast %43 : vector<2x8xf32> to vector<2x8x1xf32>
    %45 = tpu.reciprocal %44 {approx = true} : vector<2x8x1xf32> -> vector<2x8x1xf32>
    %46 = vector.broadcast %45 : vector<2x8x1xf32> to vector<2x8x8xf32>
    %47 = arith.mulf %42, %46 : vector<2x8x8xf32>
    %48 = vector.extract_strided_slice %31 {offsets = [0, 0, 0], sizes = [2, 8, 8], strides = [1, 1, 1]} : vector<2x8x32xf32> to vector<2x8x8xf32>
    "tpu.trace_start"() <{level = 10 : i32, message = "bqk,bkd->bqd"}> : () -> ()
    %cst_15 = arith.constant dense<0.000000e+00> : vector<2x8x8xf32>
    %49 = tpu.matmul %47, %48, %cst_15 {dimension_numbers = #tpu.dot_dimension_numbers<[2], [1], [1], [2], [0, 0, 0, 1, 1, 2], [0], [0]>} : vector<2x8x8xf32>, vector<2x8x8xf32>, vector<2x8x8xf32> -> vector<2x8x8xf32>
    "tpu.trace_stop"() : () -> ()
    %50 = vector.extract_strided_slice %29 {offsets = [0, 0, 8], sizes = [2, 8, 8], strides = [1, 1, 1]} : vector<2x8x32xf32> to vector<2x8x8xf32>
    %51 = vector.extract_strided_slice %30 {offsets = [0, 0, 8], sizes = [2, 8, 8], strides = [1, 1, 1]} : vector<2x8x32xf32> to vector<2x8x8xf32>
    "tpu.trace_start"() <{level = 10 : i32, message = "bqd,bkd->bqk"}> : () -> ()
    %cst_16 = arith.constant dense<0.000000e+00> : vector<2x8x8xf32>
    %52 = tpu.matmul %50, %51, %cst_16 {dimension_numbers = #tpu.dot_dimension_numbers<[2], [2], [1], [1], [0, 0, 0, 1, 1, 1], [0], [0]>} : vector<2x8x8xf32>, vector<2x8x8xf32>, vector<2x8x8xf32> -> vector<2x8x8xf32>
    "tpu.trace_stop"() : () -> ()
    %53 = vector.shape_cast %28 : vector<8x8xf32> to vector<1x8x8xf32>
    %54 = vector.broadcast %53 : vector<1x8x8xf32> to vector<2x8x8xf32>
    %55 = arith.addf %52, %54 : vector<2x8x8xf32>
    %cst_17 = arith.constant dense<0xFF800000> : vector<2x8xf32>
    %56 = vector.multi_reduction <maximumf>, %55, %cst_17 [2] : vector<2x8x8xf32> to vector<2x8xf32>
    %57 = vector.shape_cast %56 : vector<2x8xf32> to vector<2x8x1xf32>
    %58 = vector.broadcast %57 : vector<2x8x1xf32> to vector<2x8x8xf32>
    %59 = arith.subf %55, %58 : vector<2x8x8xf32>
    %60 = math.exp %59 : vector<2x8x8xf32>
    %cst_18 = arith.constant dense<0.000000e+00> : vector<2x8xf32>
    %61 = vector.multi_reduction <add>, %60, %cst_18 [2] : vector<2x8x8xf32> to vector<2x8xf32>
    %62 = vector.shape_cast %61 : vector<2x8xf32> to vector<2x8x1xf32>
    %63 = tpu.reciprocal %62 {approx = true} : vector<2x8x1xf32> -> vector<2x8x1xf32>
    %64 = vector.broadcast %63 : vector<2x8x1xf32> to vector<2x8x8xf32>
    %65 = arith.mulf %60, %64 : vector<2x8x8xf32>
    %66 = vector.extract_strided_slice %31 {offsets = [0, 0, 8], sizes = [2, 8, 8], strides = [1, 1, 1]} : vector<2x8x32xf32> to vector<2x8x8xf32>
    "tpu.trace_start"() <{level = 10 : i32, message = "bqk,bkd->bqd"}> : () -> ()
    %cst_19 = arith.constant dense<0.000000e+00> : vector<2x8x8xf32>
    %67 = tpu.matmul %65, %66, %cst_19 {dimension_numbers = #tpu.dot_dimension_numbers<[2], [1], [1], [2], [0, 0, 0, 1, 1, 2], [0], [0]>} : vector<2x8x8xf32>, vector<2x8x8xf32>, vector<2x8x8xf32> -> vector<2x8x8xf32>
    "tpu.trace_stop"() : () -> ()
    %68 = vector.extract_strided_slice %29 {offsets = [0, 0, 16], sizes = [2, 8, 8], strides = [1, 1, 1]} : vector<2x8x32xf32> to vector<2x8x8xf32>
    %69 = vector.extract_strided_slice %30 {offsets = [0, 0, 16], sizes = [2, 8, 8], strides = [1, 1, 1]} : vector<2x8x32xf32> to vector<2x8x8xf32>
    "tpu.trace_start"() <{level = 10 : i32, message = "bqd,bkd->bqk"}> : () -> ()
    %cst_20 = arith.constant dense<0.000000e+00> : vector<2x8x8xf32>
    %70 = tpu.matmul %68, %69, %cst_20 {dimension_numbers = #tpu.dot_dimension_numbers<[2], [2], [1], [1], [0, 0, 0, 1, 1, 1], [0], [0]>} : vector<2x8x8xf32>, vector<2x8x8xf32>, vector<2x8x8xf32> -> vector<2x8x8xf32>
    "tpu.trace_stop"() : () -> ()
    %71 = vector.shape_cast %28 : vector<8x8xf32> to vector<1x8x8xf32>
    %72 = vector.broadcast %71 : vector<1x8x8xf32> to vector<2x8x8xf32>
    %73 = arith.addf %70, %72 : vector<2x8x8xf32>
    %cst_21 = arith.constant dense<0xFF800000> : vector<2x8xf32>
    %74 = vector.multi_reduction <maximumf>, %73, %cst_21 [2] : vector<2x8x8xf32> to vector<2x8xf32>
    %75 = vector.shape_cast %74 : vector<2x8xf32> to vector<2x8x1xf32>
    %76 = vector.broadcast %75 : vector<2x8x1xf32> to vector<2x8x8xf32>
    %77 = arith.subf %73, %76 : vector<2x8x8xf32>
    %78 = math.exp %77 : vector<2x8x8xf32>
    %cst_22 = arith.constant dense<0.000000e+00> : vector<2x8xf32>
    %79 = vector.multi_reduction <add>, %78, %cst_22 [2] : vector<2x8x8xf32> to vector<2x8xf32>
    %80 = vector.shape_cast %79 : vector<2x8xf32> to vector<2x8x1xf32>
    %81 = tpu.reciprocal %80 {approx = true} : vector<2x8x1xf32> -> vector<2x8x1xf32>
    %82 = vector.broadcast %81 : vector<2x8x1xf32> to vector<2x8x8xf32>
    %83 = arith.mulf %78, %82 : vector<2x8x8xf32>
    %84 = vector.extract_strided_slice %31 {offsets = [0, 0, 16], sizes = [2, 8, 8], strides = [1, 1, 1]} : vector<2x8x32xf32> to vector<2x8x8xf32>
    "tpu.trace_start"() <{level = 10 : i32, message = "bqk,bkd->bqd"}> : () -> ()
    %cst_23 = arith.constant dense<0.000000e+00> : vector<2x8x8xf32>
    %85 = tpu.matmul %83, %84, %cst_23 {dimension_numbers = #tpu.dot_dimension_numbers<[2], [1], [1], [2], [0, 0, 0, 1, 1, 2], [0], [0]>} : vector<2x8x8xf32>, vector<2x8x8xf32>, vector<2x8x8xf32> -> vector<2x8x8xf32>
    "tpu.trace_stop"() : () -> ()
    %86 = vector.extract_strided_slice %29 {offsets = [0, 0, 24], sizes = [2, 8, 8], strides = [1, 1, 1]} : vector<2x8x32xf32> to vector<2x8x8xf32>
    %87 = vector.extract_strided_slice %30 {offsets = [0, 0, 24], sizes = [2, 8, 8], strides = [1, 1, 1]} : vector<2x8x32xf32> to vector<2x8x8xf32>
    "tpu.trace_start"() <{level = 10 : i32, message = "bqd,bkd->bqk"}> : () -> ()
    %cst_24 = arith.constant dense<0.000000e+00> : vector<2x8x8xf32>
    %88 = tpu.matmul %86, %87, %cst_24 {dimension_numbers = #tpu.dot_dimension_numbers<[2], [2], [1], [1], [0, 0, 0, 1, 1, 1], [0], [0]>} : vector<2x8x8xf32>, vector<2x8x8xf32>, vector<2x8x8xf32> -> vector<2x8x8xf32>
    "tpu.trace_stop"() : () -> ()
    %89 = vector.shape_cast %28 : vector<8x8xf32> to vector<1x8x8xf32>
    %90 = vector.broadcast %89 : vector<1x8x8xf32> to vector<2x8x8xf32>
    %91 = arith.addf %88, %90 : vector<2x8x8xf32>
    %cst_25 = arith.constant dense<0xFF800000> : vector<2x8xf32>
    %92 = vector.multi_reduction <maximumf>, %91, %cst_25 [2] : vector<2x8x8xf32> to vector<2x8xf32>
    %93 = vector.shape_cast %92 : vector<2x8xf32> to vector<2x8x1xf32>
    %94 = vector.broadcast %93 : vector<2x8x1xf32> to vector<2x8x8xf32>
    %95 = arith.subf %91, %94 : vector<2x8x8xf32>
    %96 = math.exp %95 : vector<2x8x8xf32>
    %cst_26 = arith.constant dense<0.000000e+00> : vector<2x8xf32>
    %97 = vector.multi_reduction <add>, %96, %cst_26 [2] : vector<2x8x8xf32> to vector<2x8xf32>
    %98 = vector.shape_cast %97 : vector<2x8xf32> to vector<2x8x1xf32>
    %99 = tpu.reciprocal %98 {approx = true} : vector<2x8x1xf32> -> vector<2x8x1xf32>
    %100 = vector.broadcast %99 : vector<2x8x1xf32> to vector<2x8x8xf32>
    %101 = arith.mulf %96, %100 : vector<2x8x8xf32>
    %102 = vector.extract_strided_slice %31 {offsets = [0, 0, 24], sizes = [2, 8, 8], strides = [1, 1, 1]} : vector<2x8x32xf32> to vector<2x8x8xf32>
    "tpu.trace_start"() <{level = 10 : i32, message = "bqk,bkd->bqd"}> : () -> ()
    %cst_27 = arith.constant dense<0.000000e+00> : vector<2x8x8xf32>
    %103 = tpu.matmul %101, %102, %cst_27 {dimension_numbers = #tpu.dot_dimension_numbers<[2], [1], [1], [2], [0, 0, 0, 1, 1, 2], [0], [0]>} : vector<2x8x8xf32>, vector<2x8x8xf32>, vector<2x8x8xf32> -> vector<2x8x8xf32>
    "tpu.trace_stop"() : () -> ()
    %104 = tpu.concatenate %49, %67, %85, %103 in 2 : vector<2x8x8xf32>, vector<2x8x8xf32>, vector<2x8x8xf32>, vector<2x8x8xf32> -> vector<2x8x32xf32>
    %105 = vector.shape_cast %104 : vector<2x8x32xf32> to vector<16x32xf32>
    %c0_28 = arith.constant 0 : index
    %c0_29 = arith.constant 0 : index
    %106 = vector.load %arg2[%c0_28, %c0_29] : memref<32x32xf32, #tpu.memory_space<vmem>>, vector<32x32xf32>
    %cst_30 = arith.constant dense<0.000000e+00> : vector<16x32xf32>
    %107 = tpu.matmul %105, %106, %cst_30 {dimension_numbers = #tpu.dot_dimension_numbers<[1], [0], [0], [1], [0, 0, 1, 1], [], []>} : vector<16x32xf32>, vector<32x32xf32>, vector<16x32xf32> -> vector<16x32xf32>
    %108 = arith.addf %0, %107 : vector<16x32xf32>
    %109 = arith.mulf %108, %108 : vector<16x32xf32>
    %cst_31 = arith.constant dense<0.000000e+00> : vector<16xf32>
    %110 = vector.multi_reduction <add>, %109, %cst_31 [1] : vector<16x32xf32> to vector<16xf32>
    %111 = vector.shape_cast %110 : vector<16xf32> to vector<16x1xf32>
    %cst_32 = arith.constant 3.200000e+01 : f32
    %112 = vector.broadcast %cst_32 : f32 to vector<16x1xf32>
    %113 = arith.divf %111, %112 : vector<16x1xf32>
    %cst_33 = arith.constant 9.99999997E-7 : f32
    %114 = vector.broadcast %cst_33 : f32 to vector<16x1xf32>
    %115 = arith.addf %113, %114 : vector<16x1xf32>
    %116 = math.rsqrt %115 : vector<16x1xf32>
    %117 = vector.broadcast %116 : vector<16x1xf32> to vector<16x32xf32>
    %118 = arith.mulf %108, %117 : vector<16x32xf32>
    %c0_34 = arith.constant 0 : index
    %c0_35 = arith.constant 0 : index
    %119 = vector.load %arg3[%c0_34, %c0_35] : memref<32x128xf32, #tpu.memory_space<vmem>>, vector<32x128xf32>
    %cst_36 = arith.constant dense<0.000000e+00> : vector<16x128xf32>
    %120 = tpu.matmul %118, %119, %cst_36 {dimension_numbers = #tpu.dot_dimension_numbers<[1], [0], [0], [1], [0, 0, 1, 1], [], []>} : vector<16x32xf32>, vector<32x128xf32>, vector<16x128xf32> -> vector<16x128xf32>
    %121 = vector.extract_strided_slice %120 {offsets = [0, 0], sizes = [16, 64], strides = [1, 1]} : vector<16x128xf32> to vector<16x64xf32>
    %122 = vector.extract_strided_slice %120 {offsets = [0, 64], sizes = [16, 64], strides = [1, 1]} : vector<16x128xf32> to vector<16x64xf32>
    %cst_37 = arith.constant 0.000000e+00 : f32
    %123 = vector.broadcast %cst_37 : f32 to vector<16x64xf32>
    %124 = arith.subf %123, %121 : vector<16x64xf32>
    %125 = math.exp %124 : vector<16x64xf32>
    %cst_38 = arith.constant 1.000000e+00 : f32
    %126 = vector.broadcast %cst_38 : f32 to vector<16x64xf32>
    %127 = arith.addf %126, %125 : vector<16x64xf32>
    %128 = tpu.reciprocal %127 {approx = true} : vector<16x64xf32> -> vector<16x64xf32>
    %129 = arith.mulf %121, %128 : vector<16x64xf32>
    %130 = arith.mulf %129, %122 : vector<16x64xf32>
    %c0_39 = arith.constant 0 : index
    %c0_40 = arith.constant 0 : index
    %131 = vector.load %arg4[%c0_39, %c0_40] : memref<64x32xf32, #tpu.memory_space<vmem>>, vector<64x32xf32>
    %cst_41 = arith.constant dense<0.000000e+00> : vector<16x32xf32>
    %132 = tpu.matmul %130, %131, %cst_41 {dimension_numbers = #tpu.dot_dimension_numbers<[1], [0], [0], [1], [0, 0, 1, 1], [], []>} : vector<16x64xf32>, vector<64x32xf32>, vector<16x32xf32> -> vector<16x32xf32>
    %133 = arith.addf %108, %132 : vector<16x32xf32>
    %c0_42 = arith.constant 0 : index
    %c0_43 = arith.constant 0 : index
    %134 = vector.load %arg7[%c0_42, %c0_43] : memref<16x32xf32, #tpu.memory_space<vmem>>, vector<16x32xf32>
    tpu.vector_store %arg7[%c0_42, %c0_43], %133 {strides = array<i32>} : memref<16x32xf32, #tpu.memory_space<vmem>>, vector<16x32xf32>,
    return
  }
}

</mosaic_0001>

<llo_original>
// kernel: tpu_custom_call.1
$region0: #{tpu_custom_call.1}
  #allocation0 [shape = 'u32[]', space=smem, size = 0x4, offset = 0x4, fixed_abs, tag = 'smem constant byte address 0x4 - core index']
  #allocation1 [shape = 'u32[144,128]{1,0:T(1,128)}', space=vmem, size = 0x12000, scoped, tag = 'internal scratch']
  %s0 = inlined_call_operand.hbm [shape: f32[16,32], index: 0, kind: input, shape index: {}]
  %s1 = inlined_call_operand.vmem [shape: f32[32,160], index: 1, kind: input, shape index: {}]
  %s2 = inlined_call_operand.vmem [shape: f32[32,32], index: 2, kind: input, shape index: {}]
  %s3 = inlined_call_operand.hbm [shape: f32[32,128], index: 3, kind: input, shape index: {}]
  %s4 = inlined_call_operand.vmem [shape: f32[64,32], index: 4, kind: input, shape index: {}]
  %s5 = inlined_call_operand.hbm [shape: f32[16,64], index: 5, kind: input, shape index: {}]
  %s6 = inlined_call_operand.hbm [shape: f32[16,64], index: 6, kind: input, shape index: {}]
  %s7 = inlined_call_operand.hbm [shape: f32[16,32], index: 7, kind: output, shape index: {}]
  %s8 = sld [smem:[#allocation0]]
  $region54: #{tpu_custom_call.1} parent=0
    _
  %s10 = ssub.s32 1, %s8
  %s11 = scalar_select 0, %s10, %s8
  $region1: #{tpu_custom_call.1} parent=0
    #allocation2 [shape = 'u8[8192]{0}', space=vmem, size = 0x2000, scoped, tag = 'input window, operand 0, single buffered']
    #allocation3 [shape = 's32[1]{0}', space=sflag, size = 0x4, scoped, tag = 'scoped memory for tpu_custom_call.1']
    #allocation4 [shape = 's32[1]{0}', space=sflag, size = 0x4, scoped, tag = 'scoped memory for tpu_custom_call.1']
    #allocation5 [shape = 'u8[16384]{0}', space=vmem, size = 0x4000, scoped, tag = 'input window, operand 3, single buffered']
    #allocation6 [shape = 's32[1]{0}', space=sflag, size = 0x4, scoped, tag = 'scoped memory for tpu_custom_call.1']
    #allocation7 [shape = 'u8[8192]{0}', space=vmem, size = 0x2000, scoped, tag = 'input window, operand 5, single buffered']
    #allocation8 [shape = 'u8[8192]{0}', space=vmem, size = 0x2000, scoped, tag = 'input window, operand 6, single buffered']
    #allocation9 [shape = 's32[1]{0}', space=sflag, size = 0x4, scoped, tag = 'scoped memory for tpu_custom_call.1']
    #allocation10 [shape = 'u8[8192]{0}', space=vmem, size = 0x2000, scoped, tag = 'output window, operand 0, single buffered']
    %12 = vsyncpa [#allocation3], 0
    %13 = vsyncpa [#allocation6], 0
    %14 = vsyncpa [#allocation9], 0
    %15 = vsyncpa [#allocation4], 0
    // Predicated region
    $region2: #{tpu_custom_call.1} parent=1 // pred_check
      _
    $region3: #{tpu_custom_call.1} parent=1 // pred_check_branch
      %17 = sbr.rel (0) target = $region5
    $region4: #{tpu_custom_call.1} parent=1 // pred_region
      %s19 = ssub.s32 256, 256
      %20 = vsyncadd [#allocation3], %s19
      %s21 = sshll.u32 [#allocation2], 4
      %s22 = int_to_ptr.vmem [resolvable:$true] %s21
      %27 = dma.hbm_to_vmem [thread:$0]  %s0, 256, %s22, [#allocation3], 128, 128, 8
    $region5: #{tpu_custom_call.1} parent=1 // pred_fallthru
      _
    // Predicated region
    $region6: #{tpu_custom_call.1} parent=1 // pred_check
      _
    $region7: #{tpu_custom_call.1} parent=1 // pred_check_branch
      %29 = sbr.rel (0) target = $region9
    $region8: #{tpu_custom_call.1} parent=1 // pred_region
      _
    $region9: #{tpu_custom_call.1} parent=1 // pred_fallthru
      _
    // Predicated region
    $region10: #{tpu_custom_call.1} parent=1 // pred_check
      _
    $region11: #{tpu_custom_call.1} parent=1 // pred_check_branch
      %31 = sbr.rel (0) target = $region13
    $region12: #{tpu_custom_call.1} parent=1 // pred_region
      _
    $region13: #{tpu_custom_call.1} parent=1 // pred_fallthru
      _
    // Predicated region
    $region14: #{tpu_custom_call.1} parent=1 // pred_check
      _
    $region15: #{tpu_custom_call.1} parent=1 // pred_check_branch
      %33 = sbr.rel (0) target = $region17
    $region16: #{tpu_custom_call.1} parent=1 // pred_region
      %s35 = ssub.s32 512, 512
      %36 = vsyncadd [#allocation6], %s35
      %s37 = sshll.u32 [#allocation5], 4
      %s38 = int_to_ptr.vmem [resolvable:$true] %s37
      %43 = dma.hbm_to_vmem [thread:$0]  %s3, 512, %s38, [#allocation6], 128, 128, 8
    $region17: #{tpu_custom_call.1} parent=1 // pred_fallthru
      _
    // Predicated region
    $region18: #{tpu_custom_call.1} parent=1 // pred_check
      _
    $region19: #{tpu_custom_call.1} parent=1 // pred_check_branch
      %45 = sbr.rel (0) target = $region21
    $region20: #{tpu_custom_call.1} parent=1 // pred_region
      _
    $region21: #{tpu_custom_call.1} parent=1 // pred_fallthru
      _
    // Predicated region
    $region22: #{tpu_custom_call.1} parent=1 // pred_check
      _
    $region23: #{tpu_custom_call.1} parent=1 // pred_check_branch
      %47 = sbr.rel (0) target = $region25
    $region24: #{tpu_custom_call.1} parent=1 // pred_region
      %s49 = ssub.s32 256, 256
      %50 = vsyncadd [#allocation6], %s49
      %s51 = sshll.u32 [#allocation7], 4
      %s52 = int_to_ptr.vmem [resolvable:$true] %s51
      %57 = dma.hbm_to_vmem [thread:$0]  %s5, 256, %s52, [#allocation6], 128, 128, 8
    $region25: #{tpu_custom_call.1} parent=1 // pred_fallthru
      _
    // Predicated region
    $region26: #{tpu_custom_call.1} parent=1 // pred_check
      _
    $region27: #{tpu_custom_call.1} parent=1 // pred_check_branch
      %59 = sbr.rel (0) target = $region29
    $region28: #{tpu_custom_call.1} parent=1 // pred_region
      %s61 = ssub.s32 256, 256
      %62 = vsyncadd [#allocation9], %s61
      %s63 = sshll.u32 [#allocation8], 4
      %s64 = int_to_ptr.vmem [resolvable:$true] %s63
      %69 = dma.hbm_to_vmem [thread:$0]  %s6, 256, %s64, [#allocation9], 128, 128, 8
    $region29: #{tpu_custom_call.1} parent=1 // pred_fallthru
      _
    // Predicated region
    $region30: #{tpu_custom_call.1} parent=1 // pred_check
      _
    $region31: #{tpu_custom_call.1} parent=1 // pred_check_branch
      %71 = sbr.rel (0) target = $region33
    $region32: #{tpu_custom_call.1} parent=1 // pred_region
      %72 = dma.done [#allocation3], 256
    $region33: #{tpu_custom_call.1} parent=1 // pred_fallthru
      _
    // Predicated region
    $region34: #{tpu_custom_call.1} parent=1 // pred_check
      _
    $region35: #{tpu_custom_call.1} parent=1 // pred_check_branch
      %74 = sbr.rel (0) target = $region37
    $region36: #{tpu_custom_call.1} parent=1 // pred_region
      %75 = dma.done [#allocation6], 512
    $region37: #{tpu_custom_call.1} parent=1 // pred_fallthru
      _
    // Predicated region
    $region38: #{tpu_custom_call.1} parent=1 // pred_check
      _
    $region39: #{tpu_custom_call.1} parent=1 // pred_check_branch
      %77 = sbr.rel (0) target = $region41
    $region40: #{tpu_custom_call.1} parent=1 // pred_region
      %78 = dma.done [#allocation6], 256
    $region41: #{tpu_custom_call.1} parent=1 // pred_fallthru
      _
    // Predicated region
    $region42: #{tpu_custom_call.1} parent=1 // pred_check
      _
    $region43: #{tpu_custom_call.1} parent=1 // pred_check_branch
      %80 = sbr.rel (0) target = $region45
    $region44: #{tpu_custom_call.1} parent=1 // pred_region
      %81 = dma.done [#allocation9], 256
    $region45: #{tpu_custom_call.1} parent=1 // pred_fallthru
      _
    %v82 = vld [vmem:[#allocation2] sm:$0xff]
    %v83 = vld [vmem:[#allocation2 + $0x8] sm:$0xff]
    %v84 = vmul.f32 %v82, %v82
    %v85 = vmul.f32 %v83, %v83
    %vm86 = vcmask 261120
    %v87 = vsel %vm86, %v84, 0.0
    %88 = vadd.xlane.f32.xlu0 %v87
    %v89 = vpop.xlane.xlu0 %88
    %v90 = vsel %vm86, %v85, 0.0
    %91 = vadd.xlane.f32.xlu0 %v90
    %v92 = vpop.xlane.xlu0 %91
    %v93 = vrcp.pop 32.0
    %v94 = vmul.f32 %v89, %v93
    %v95 = vmul.f32 %v92, %v93
    %v96 = vadd.f32 %v94, 1e-06
    %v97 = vadd.f32 %v95, 1e-06
    %v98 = vrsqrt.pop %v96
    %v99 = vrsqrt.pop %v97
    %v100 = vmul.f32 %v82, %v98
    %v101 = vmul.f32 %v83, %v99
    %v102 = vld [vmem:[%s1] sm:$0xff]
    %v103 = vld [vmem:[%s1 + $0x8] sm:$0xff]
    %v104 = vld [vmem:[%s1 + $0x10] sm:$0xff]
    %v105 = vld [vmem:[%s1 + $0x18] sm:$0xff]
    %v106 = vld [vmem:[%s1 + $0x20] sm:$0xff]
    %v107 = vld [vmem:[%s1 + $0x28] sm:$0xff]
    %v108 = vld [vmem:[%s1 + $0x30] sm:$0xff]
    %v109 = vld [vmem:[%s1 + $0x38] sm:$0xff]
    %v111 = vsel %vm86, %v100, 0
    %v114 = vsel %vm86, %v101, 0
    %116 = vmatprep.subr.mxu0 0.0
    %117 = vmatpush1.msra.mxu0 0.0
    %118 = vmatprep.subr.mxu0 0.0
    %119 = vmatpush1.msra.mxu0 0.0
    %120 = vmatprep.subr.mxu0 0.0
    %121 = vmatpush1.msra.mxu0 0.0
    %122 = vmatprep.subr.mxu0 0.0
    %123 = vmatpush1.msra.mxu0 0.0
    %124 = vmatprep.subr.mxu0 0.0
    %125 = vmatpush1.msra.mxu0 0.0
    %126 = vmatprep.subr.mxu0 0.0
    %127 = vmatpush1.msra.mxu0 0.0
    %128 = vmatprep.subr.mxu0 0.0
    %129 = vmatpush1.msra.mxu0 0.0
    %130 = vmatprep.subr.mxu0 0.0
    %131 = vmatpush1.msra.mxu0 0.0
    %132 = vmatprep.subr.mxu0 0.0
    %133 = vmatpush1.msra.mxu0 0.0
    %134 = vmatprep.subr.mxu0 0.0
    %135 = vmatpush1.msra.mxu0 0.0
    %136 = vmatprep.subr.mxu0 0.0
    %137 = vmatpush1.msra.mxu0 0.0
    %138 = vmatprep.subr.mxu0 0.0
    %139 = vmatpush1.msra.mxu0 0.0
    %140 = vmatprep.subr.mxu0 %v109
    %141 = vmatpush1.msra.mxu0 %v108
    %142 = vmatprep.subr.mxu0 %v107
    %143 = vmatpush1.msra.mxu0 %v106
    %144 = vmatprep.subr.mxu0 %v105
    %145 = vmatpush1.msra.mxu0 %v104
    %146 = vmatprep.subr.mxu0 %v103
    %147 = vmatpush1.msra.mxu0 %v102
    %148 = vmatprep.subr.mxu0 0.0
    %149 = vmatpush2.msra.mxu0 0.0
    %150 = vmatprep.subr.mxu0 0.0
    %151 = vmatpush2.msra.mxu0 0.0
    %152 = vmatprep.subr.mxu0 0.0
    %153 = vmatpush2.msra.mxu0 0.0
    %154 = vmatprep.subr.mxu0 0.0
    %155 = vmatpush2.msra.mxu0 0.0
    %156 = vmatprep.subr.mxu0 0.0
    %157 = vmatpush2.msra.mxu0 0.0
    %158 = vmatprep.subr.mxu0 0.0
    %159 = vmatpush2.msra.mxu0 0.0
    %160 = vmatprep.subr.mxu0 0.0
    %161 = vmatpush2.msra.mxu0 0.0
    %162 = vmatprep.subr.mxu0 0.0
    %163 = vmatpush2.msra.mxu0 0.0
    %164 = vmatprep.subr.mxu0 0.0
    %165 = vmatpush2.msra.mxu0 0.0
    %166 = vmatprep.subr.mxu0 0.0
    %167 = vmatpush2.msra.mxu0 0.0
    %168 = vmatprep.subr.mxu0 0.0
    %169 = vmatpush2.msra.mxu0 0.0
    %170 = vmatprep.subr.mxu0 0.0
    %171 = vmatpush2.msra.mxu0 0.0
    %172 = vmatprep.subr.mxu0 0.0
    %173 = vmatpush2.msra.mxu0 0.0
    %174 = vmatprep.subr.mxu0 0.0
    %175 = vmatpush2.msra.mxu0 0.0
    %176 = vmatprep.subr.mxu0 0.0
    %177 = vmatpush2.msra.mxu0 0.0
    %178 = vmatprep.subr.mxu0 0.0
    %179 = vmatpush2.msra.mxu0 0.0
    %180 = vmatprep.mubr.f32.mxu0 0.0
    %181 = vmatmul.mubr.f32.gmra.mxu0 %v111
    %v182 = vpop.f32.mrf.mxu0
    %v183 = vadd.f32 0.0, %v182
    %v184 = vpop.f32.mrf.mxu0
    %v185 = vadd.f32 0.0, %v184
    %186 = vmatprep.mubr.f32.mxu0 0.0
    %187 = vmatmul.mubr.f32.gmra.mxu0 %v114
    %v188 = vpop.f32.mrf.mxu0
    %v189 = vadd.f32 0.0, %v188
    %v190 = vpop.f32.mrf.mxu0
    %v191 = vadd.f32 0.0, %v190
    %192 = vdwg.mxu0
    %v193 = vld [vmem:[#allocation7] sm:$0xff]
    %v194 = vld [vmem:[#allocation7 + $0x8] sm:$0xff]
    %v195 = vmul.f32 %v183, %v193
    %v196 = vmul.f32 %v189, %v194
    %v197 = vld [vmem:[#allocation8] sm:$0xff]
    %v198 = vld [vmem:[#allocation8 + $0x8] sm:$0xff]
    %201 = vrot.lane.b32.xlu0 %v197, 64
    %v202 = vpop.permute.xlu0 %201
    %203 = vrot.lane.b32.xlu0 %v198, 64
    %v204 = vpop.permute.xlu0 %203
    %v207 = vmul.f32 %v183, %v202
    %v208 = vmul.f32 %v189, %v204
    %211 = vrot.lane.b32.xlu0 %v207, 64
    %v212 = vpop.permute.xlu0 %211
    %213 = vrot.lane.b32.xlu0 %v208, 64
    %v214 = vpop.permute.xlu0 %213
    %v217 = vadd.f32 %v195, %v212
    %v218 = vadd.f32 %v196, %v214
    %v219 = vlaneseq
    %v220 = vshrl.u32 %v219, 7
    %v221 = vlaneseq
    %v222 = vand.u32 %v221, 127
    %vm223 = vcmp.gt.s32.totalorder %v222, %v220
    %v224 = vsel %vm223, -1e+30, 0.0
    %226 = vrot.lane.b32.xlu0 %v217, 96
    %v227 = vpop.permute.xlu0 %226
    %vm228 = vcmask 64512
    %v229 = vsel %vm228, %v217, 0
    %v231 = vsel %vm228, %v227, 0
    %233 = vmatprep.subr.mxu0 0.0
    %234 = vmatpush1.xpose.msra.mxu0 0.0
    %235 = vmatprep.subr.mxu0 0.0
    %236 = vmatpush1.xpose.msra.mxu0 0.0
    %237 = vmatprep.subr.mxu0 0.0
    %238 = vmatpush1.xpose.msra.mxu0 0.0
    %239 = vmatprep.subr.mxu0 0.0
    %240 = vmatpush1.xpose.msra.mxu0 0.0
    %241 = vmatprep.subr.mxu0 0.0
    %242 = vmatpush1.xpose.msra.mxu0 0.0
    %243 = vmatprep.subr.mxu0 0.0
    %244 = vmatpush1.xpose.msra.mxu0 0.0
    %245 = vmatprep.subr.mxu0 0.0
    %246 = vmatpush1.xpose.msra.mxu0 0.0
    %247 = vmatprep.subr.mxu0 0.0
    %248 = vmatpush1.xpose.msra.mxu0 0.0
    %249 = vmatprep.subr.mxu0 0.0
    %250 = vmatpush1.xpose.msra.mxu0 0.0
    %251 = vmatprep.subr.mxu0 0.0
    %252 = vmatpush1.xpose.msra.mxu0 0.0
    %253 = vmatprep.subr.mxu0 0.0
    %254 = vmatpush1.xpose.msra.mxu0 0.0
    %255 = vmatprep.subr.mxu0 0.0
    %256 = vmatpush1.xpose.msra.mxu0 0.0
    %257 = vmatprep.subr.mxu0 0.0
    %258 = vmatpush1.xpose.msra.mxu0 0.0
    %259 = vmatprep.subr.mxu0 0.0
    %260 = vmatpush1.xpose.msra.mxu0 0.0
    %261 = vmatprep.subr.mxu0 0.0
    %262 = vmatpush1.xpose.msra.mxu0 0.0
    %263 = vmatprep.subr.mxu0 0.0
    %264 = vmatpush1.xpose.msra.mxu0 %v231
    %265 = vmatprep.subr.mxu0 0.0
    %266 = vmatpush2.xpose.msra.mxu0 0.0
    %267 = vmatprep.subr.mxu0 0.0
    %268 = vmatpush2.xpose.msra.mxu0 0.0
    %269 = vmatprep.subr.mxu0 0.0
    %270 = vmatpush2.xpose.msra.mxu0 0.0
    %271 = vmatprep.subr.mxu0 0.0
    %272 = vmatpush2.xpose.msra.mxu0 0.0
    %273 = vmatprep.subr.mxu0 0.0
    %274 = vmatpush2.xpose.msra.mxu0 0.0
    %275 = vmatprep.subr.mxu0 0.0
    %276 = vmatpush2.xpose.msra.mxu0 0.0
    %277 = vmatprep.subr.mxu0 0.0
    %278 = vmatpush2.xpose.msra.mxu0 0.0
    %279 = vmatprep.subr.mxu0 0.0
    %280 = vmatpush2.xpose.msra.mxu0 0.0
    %281 = vmatprep.subr.mxu0 0.0
    %282 = vmatpush2.xpose.msra.mxu0 0.0
    %283 = vmatprep.subr.mxu0 0.0
    %284 = vmatpush2.xpose.msra.mxu0 0.0
    %285 = vmatprep.subr.mxu0 0.0
    %286 = vmatpush2.xpose.msra.mxu0 0.0
    %287 = vmatprep.subr.mxu0 0.0
    %288 = vmatpush2.xpose.msra.mxu0 0.0
    %289 = vmatprep.subr.mxu0 0.0
    %290 = vmatpush2.xpose.msra.mxu0 0.0
    %291 = vmatprep.subr.mxu0 0.0
    %292 = vmatpush2.xpose.msra.mxu0 0.0
    %293 = vmatprep.subr.mxu0 0.0
    %294 = vmatpush2.xpose.msra.mxu0 0.0
    %295 = vmatprep.subr.mxu0 0.0
    %296 = vmatpush2.xpose.msra.mxu0 0.0
    %297 = vmatprep.mubr.f32.mxu0 0.0
    %298 = vmatmul.mubr.f32.gmra.mxu0 %v229
    %v299 = vpop.f32.mrf.mxu0
    %v300 = vadd.f32 %v224, %v299
    %v301 = vpop.f32.mrf.mxu0
    %302 = vdwg.mxu0
    %304 = vrot.lane.b32.xlu0 %v218, 96
    %v305 = vpop.permute.xlu0 %304
    %v306 = vsel %vm228, %v218, 0
    %v308 = vsel %vm228, %v305, 0
    %310 = vmatprep.subr.mxu0 0.0
    %311 = vmatpush1.xpose.msra.mxu0 0.0
    %312 = vmatprep.subr.mxu0 0.0
    %313 = vmatpush1.xpose.msra.mxu0 0.0
    %314 = vmatprep.subr.mxu0 0.0
    %315 = vmatpush1.xpose.msra.mxu0 0.0
    %316 = vmatprep.subr.mxu0 0.0
    %317 = vmatpush1.xpose.msra.mxu0 0.0
    %318 = vmatprep.subr.mxu0 0.0
    %319 = vmatpush1.xpose.msra.mxu0 0.0
    %320 = vmatprep.subr.mxu0 0.0
    %321 = vmatpush1.xpose.msra.mxu0 0.0
    %322 = vmatprep.subr.mxu0 0.0
    %323 = vmatpush1.xpose.msra.mxu0 0.0
    %324 = vmatprep.subr.mxu0 0.0
    %325 = vmatpush1.xpose.msra.mxu0 0.0
    %326 = vmatprep.subr.mxu0 0.0
    %327 = vmatpush1.xpose.msra.mxu0 0.0
    %328 = vmatprep.subr.mxu0 0.0
    %329 = vmatpush1.xpose.msra.mxu0 0.0
    %330 = vmatprep.subr.mxu0 0.0
    %331 = vmatpush1.xpose.msra.mxu0 0.0
    %332 = vmatprep.subr.mxu0 0.0
    %333 = vmatpush1.xpose.msra.mxu0 0.0
    %334 = vmatprep.subr.mxu0 0.0
    %335 = vmatpush1.xpose.msra.mxu0 0.0
    %336 = vmatprep.subr.mxu0 0.0
    %337 = vmatpush1.xpose.msra.mxu0 0.0
    %338 = vmatprep.subr.mxu0 0.0
    %339 = vmatpush1.xpose.msra.mxu0 0.0
    %340 = vmatprep.subr.mxu0 0.0
    %341 = vmatpush1.xpose.msra.mxu0 %v308
    %342 = vmatprep.subr.mxu0 0.0
    %343 = vmatpush2.xpose.msra.mxu0 0.0
    %344 = vmatprep.subr.mxu0 0.0
    %345 = vmatpush2.xpose.msra.mxu0 0.0
    %346 = vmatprep.subr.mxu0 0.0
    %347 = vmatpush2.xpose.msra.mxu0 0.0
    %348 = vmatprep.subr.mxu0 0.0
    %349 = vmatpush2.xpose.msra.mxu0 0.0
    %350 = vmatprep.subr.mxu0 0.0
    %351 = vmatpush2.xpose.msra.mxu0 0.0
    %352 = vmatprep.subr.mxu0 0.0
    %353 = vmatpush2.xpose.msra.mxu0 0.0
    %354 = vmatprep.subr.mxu0 0.0
    %355 = vmatpush2.xpose.msra.mxu0 0.0
    %356 = vmatprep.subr.mxu0 0.0
    %357 = vmatpush2.xpose.msra.mxu0 0.0
    %358 = vmatprep.subr.mxu0 0.0
    %359 = vmatpush2.xpose.msra.mxu0 0.0
    %360 = vmatprep.subr.mxu0 0.0
    %361 = vmatpush2.xpose.msra.mxu0 0.0
    %362 = vmatprep.subr.mxu0 0.0
    %363 = vmatpush2.xpose.msra.mxu0 0.0
    %364 = vmatprep.subr.mxu0 0.0
    %365 = vmatpush2.xpose.msra.mxu0 0.0
    %366 = vmatprep.subr.mxu0 0.0
    %367 = vmatpush2.xpose.msra.mxu0 0.0
    %368 = vmatprep.subr.mxu0 0.0
    %369 = vmatpush2.xpose.msra.mxu0 0.0
    %370 = vmatprep.subr.mxu0 0.0
    %371 = vmatpush2.xpose.msra.mxu0 0.0
    %372 = vmatprep.subr.mxu0 0.0
    %373 = vmatpush2.xpose.msra.mxu0 0.0
    %374 = vmatprep.mubr.f32.mxu0 0.0
    %375 = vmatmul.mubr.f32.gmra.mxu0 %v306
    %v376 = vpop.f32.mrf.mxu0
    %v377 = vadd.f32 %v224, %v376
    %v378 = vpop.f32.mrf.mxu0
    %379 = vdwg.mxu0
    %v380 = vsel %vm228, %v300, -inf
    %381 = vmax.xlane.f32.xlu0 %v380
    %v382 = vpop.xlane.xlu0 %381
    %v383 = vsel %vm228, %v377, -inf
    %384 = vmax.xlane.f32.xlu0 %v383
    %v385 = vpop.xlane.xlu0 %384
    %v386 = vsub.f32 %v300, %v382
    %v387 = vsub.f32 %v377, %v385
    %v388 = vmul.f32 %v386, 1.442695
    %v389 = vpow.pop %v388
    %v390 = vmul.f32 %v387, 1.442695
    %v391 = vpow.pop %v390
    %v392 = vsel %vm228, %v389, 0.0
    %393 = vadd.xlane.f32.xlu0 %v392
    %v394 = vpop.xlane.xlu0 %393
    %v395 = vsel %vm228, %v391, 0.0
    %396 = vadd.xlane.f32.xlu0 %v395
    %v397 = vpop.xlane.xlu0 %396
    %v398 = vrcp.pop %v394
    %v399 = vrcp.pop %v397
    %v400 = vmul.f32 %v389, %v398
    %v401 = vmul.f32 %v391, %v399
    %v403 = vsel %vm228, %v400, 0
    %405 = vmatprep.subr.mxu0 0.0
    %406 = vmatpush1.msra.mxu0 0.0
    %407 = vmatprep.subr.mxu0 0.0
    %408 = vmatpush1.msra.mxu0 0.0
    %409 = vmatprep.subr.mxu0 0.0
    %410 = vmatpush1.msra.mxu0 0.0
    %411 = vmatprep.subr.mxu0 0.0
    %412 = vmatpush1.msra.mxu0 0.0
    %413 = vmatprep.subr.mxu0 0.0
    %414 = vmatpush1.msra.mxu0 0.0
    %415 = vmatprep.subr.mxu0 0.0
    %416 = vmatpush1.msra.mxu0 0.0
    %417 = vmatprep.subr.mxu0 0.0
    %418 = vmatpush1.msra.mxu0 0.0
    %419 = vmatprep.subr.mxu0 0.0
    %420 = vmatpush1.msra.mxu0 0.0
    %421 = vmatprep.subr.mxu0 0.0
    %422 = vmatpush1.msra.mxu0 0.0
    %423 = vmatprep.subr.mxu0 0.0
    %424 = vmatpush1.msra.mxu0 0.0
    %425 = vmatprep.subr.mxu0 0.0
    %426 = vmatpush1.msra.mxu0 0.0
    %427 = vmatprep.subr.mxu0 0.0
    %428 = vmatpush1.msra.mxu0 0.0
    %429 = vmatprep.subr.mxu0 0.0
    %430 = vmatpush1.msra.mxu0 0.0
    %431 = vmatprep.subr.mxu0 0.0
    %432 = vmatpush1.msra.mxu0 0.0
    %433 = vmatprep.subr.mxu0 0.0
    %434 = vmatpush1.msra.mxu0 0.0
    %435 = vmatprep.subr.mxu0 0.0
    %436 = vmatpush1.msra.mxu0 %v185
    %437 = vmatprep.subr.mxu0 0.0
    %438 = vmatpush2.msra.mxu0 0.0
    %439 = vmatprep.subr.mxu0 0.0
    %440 = vmatpush2.msra.mxu0 0.0
    %441 = vmatprep.subr.mxu0 0.0
    %442 = vmatpush2.msra.mxu0 0.0
    %443 = vmatprep.subr.mxu0 0.0
    %444 = vmatpush2.msra.mxu0 0.0
    %445 = vmatprep.subr.mxu0 0.0
    %446 = vmatpush2.msra.mxu0 0.0
    %447 = vmatprep.subr.mxu0 0.0
    %448 = vmatpush2.msra.mxu0 0.0
    %449 = vmatprep.subr.mxu0 0.0
    %450 = vmatpush2.msra.mxu0 0.0
    %451 = vmatprep.subr.mxu0 0.0
    %452 = vmatpush2.msra.mxu0 0.0
    %453 = vmatprep.subr.mxu0 0.0
    %454 = vmatpush2.msra.mxu0 0.0
    %455 = vmatprep.subr.mxu0 0.0
    %456 = vmatpush2.msra.mxu0 0.0
    %457 = vmatprep.subr.mxu0 0.0
    %458 = vmatpush2.msra.mxu0 0.0
    %459 = vmatprep.subr.mxu0 0.0
    %460 = vmatpush2.msra.mxu0 0.0
    %461 = vmatprep.subr.mxu0 0.0
    %462 = vmatpush2.msra.mxu0 0.0
    %463 = vmatprep.subr.mxu0 0.0
    %464 = vmatpush2.msra.mxu0 0.0
    %465 = vmatprep.subr.mxu0 0.0
    %466 = vmatpush2.msra.mxu0 0.0
    %467 = vmatprep.subr.mxu0 0.0
    %468 = vmatpush2.msra.mxu0 0.0
    %469 = vmatprep.mubr.f32.mxu0 0.0
    %470 = vmatmul.mubr.f32.gmra.mxu0 %v403
    %v471 = vpop.f32.mrf.mxu0
    %v472 = vadd.f32 0.0, %v471
    %v473 = vpop.f32.mrf.mxu0
    %474 = vdwg.mxu0
    %v476 = vsel %vm228, %v401, 0
    %478 = vmatprep.subr.mxu0 0.0
    %479 = vmatpush1.msra.mxu0 0.0
    %480 = vmatprep.subr.mxu0 0.0
    %481 = vmatpush1.msra.mxu0 0.0
    %482 = vmatprep.subr.mxu0 0.0
    %483 = vmatpush1.msra.mxu0 0.0
    %484 = vmatprep.subr.mxu0 0.0
    %485 = vmatpush1.msra.mxu0 0.0
    %486 = vmatprep.subr.mxu0 0.0
    %487 = vmatpush1.msra.mxu0 0.0
    %488 = vmatprep.subr.mxu0 0.0
    %489 = vmatpush1.msra.mxu0 0.0
    %490 = vmatprep.subr.mxu0 0.0
    %491 = vmatpush1.msra.mxu0 0.0
    %492 = vmatprep.subr.mxu0 0.0
    %493 = vmatpush1.msra.mxu0 0.0
    %494 = vmatprep.subr.mxu0 0.0
    %495 = vmatpush1.msra.mxu0 0.0
    %496 = vmatprep.subr.mxu0 0.0
    %497 = vmatpush1.msra.mxu0 0.0
    %498 = vmatprep.subr.mxu0 0.0
    %499 = vmatpush1.msra.mxu0 0.0
    %500 = vmatprep.subr.mxu0 0.0
    %501 = vmatpush1.msra.mxu0 0.0
    %502 = vmatprep.subr.mxu0 0.0
    %503 = vmatpush1.msra.mxu0 0.0
    %504 = vmatprep.subr.mxu0 0.0
    %505 = vmatpush1.msra.mxu0 0.0
    %506 = vmatprep.subr.mxu0 0.0
    %507 = vmatpush1.msra.mxu0 0.0
    %508 = vmatprep.subr.mxu0 0.0
    %509 = vmatpush1.msra.mxu0 %v191
    %510 = vmatprep.subr.mxu0 0.0
    %511 = vmatpush2.msra.mxu0 0.0
    %512 = vmatprep.subr.mxu0 0.0
    %513 = vmatpush2.msra.mxu0 0.0
    %514 = vmatprep.subr.mxu0 0.0
    %515 = vmatpush2.msra.mxu0 0.0
    %516 = vmatprep.subr.mxu0 0.0
    %517 = vmatpush2.msra.mxu0 0.0
    %518 = vmatprep.subr.mxu0 0.0
    %519 = vmatpush2.msra.mxu0 0.0
    %520 = vmatprep.subr.mxu0 0.0
    %521 = vmatpush2.msra.mxu0 0.0
    %522 = vmatprep.subr.mxu0 0.0
    %523 = vmatpush2.msra.mxu0 0.0
    %524 = vmatprep.subr.mxu0 0.0
    %525 = vmatpush2.msra.mxu0 0.0
    %526 = vmatprep.subr.mxu0 0.0
    %527 = vmatpush2.msra.mxu0 0.0
    %528 = vmatprep.subr.mxu0 0.0
    %529 = vmatpush2.msra.mxu0 0.0
    %530 = vmatprep.subr.mxu0 0.0
    %531 = vmatpush2.msra.mxu0 0.0
    %532 = vmatprep.subr.mxu0 0.0
    %533 = vmatpush2.msra.mxu0 0.0
    %534 = vmatprep.subr.mxu0 0.0
    %535 = vmatpush2.msra.mxu0 0.0
    %536 = vmatprep.subr.mxu0 0.0
    %537 = vmatpush2.msra.mxu0 0.0
    %538 = vmatprep.subr.mxu0 0.0
    %539 = vmatpush2.msra.mxu0 0.0
    %540 = vmatprep.subr.mxu0 0.0
    %541 = vmatpush2.msra.mxu0 0.0
    %542 = vmatprep.mubr.f32.mxu0 0.0
    %543 = vmatmul.mubr.f32.gmra.mxu0 %v476
    %v544 = vpop.f32.mrf.mxu0
    %v545 = vadd.f32 0.0, %v544
    %v546 = vpop.f32.mrf.mxu0
    %547 = vdwg.mxu0
    %548 = vrot.lane.b32.xlu0 %v217, 120
    %v549 = vpop.permute.xlu0 %548
    %550 = vrot.lane.b32.xlu0 %v217, 88
    %v551 = vpop.permute.xlu0 %550
    %v552 = vsel %vm228, %v549, 0
    %v554 = vsel %vm228, %v551, 0
    %556 = vmatprep.subr.mxu0 0.0
    %557 = vmatpush1.xpose.msra.mxu0 0.0
    %558 = vmatprep.subr.mxu0 0.0
    %559 = vmatpush1.xpose.msra.mxu0 0.0
    %560 = vmatprep.subr.mxu0 0.0
    %561 = vmatpush1.xpose.msra.mxu0 0.0
    %562 = vmatprep.subr.mxu0 0.0
    %563 = vmatpush1.xpose.msra.mxu0 0.0
    %564 = vmatprep.subr.mxu0 0.0
    %565 = vmatpush1.xpose.msra.mxu0 0.0
    %566 = vmatprep.subr.mxu0 0.0
    %567 = vmatpush1.xpose.msra.mxu0 0.0
    %568 = vmatprep.subr.mxu0 0.0
    %569 = vmatpush1.xpose.msra.mxu0 0.0
    %570 = vmatprep.subr.mxu0 0.0
    %571 = vmatpush1.xpose.msra.mxu0 0.0
    %572 = vmatprep.subr.mxu0 0.0
    %573 = vmatpush1.xpose.msra.mxu0 0.0
    %574 = vmatprep.subr.mxu0 0.0
    %575 = vmatpush1.xpose.msra.mxu0 0.0
    %576 = vmatprep.subr.mxu0 0.0
    %577 = vmatpush1.xpose.msra.mxu0 0.0
    %578 = vmatprep.subr.mxu0 0.0
    %579 = vmatpush1.xpose.msra.mxu0 0.0
    %580 = vmatprep.subr.mxu0 0.0
    %581 = vmatpush1.xpose.msra.mxu0 0.0
    %582 = vmatprep.subr.mxu0 0.0
    %583 = vmatpush1.xpose.msra.mxu0 0.0
    %584 = vmatprep.subr.mxu0 0.0
    %585 = vmatpush1.xpose.msra.mxu0 0.0
    %586 = vmatprep.subr.mxu0 0.0
    %587 = vmatpush1.xpose.msra.mxu0 %v554
    %588 = vmatprep.subr.mxu0 0.0
    %589 = vmatpush2.xpose.msra.mxu0 0.0
    %590 = vmatprep.subr.mxu0 0.0
    %591 = vmatpush2.xpose.msra.mxu0 0.0
    %592 = vmatprep.subr.mxu0 0.0
    %593 = vmatpush2.xpose.msra.mxu0 0.0
    %594 = vmatprep.subr.mxu0 0.0
    %595 = vmatpush2.xpose.msra.mxu0 0.0
    %596 = vmatprep.subr.mxu0 0.0
    %597 = vmatpush2.xpose.msra.mxu0 0.0
    %598 = vmatprep.subr.mxu0 0.0
    %599 = vmatpush2.xpose.msra.mxu0 0.0
    %600 = vmatprep.subr.mxu0 0.0
    %601 = vmatpush2.xpose.msra.mxu0 0.0
    %602 = vmatprep.subr.mxu0 0.0
    %603 = vmatpush2.xpose.msra.mxu0 0.0
    %604 = vmatprep.subr.mxu0 0.0
    %605 = vmatpush2.xpose.msra.mxu0 0.0
    %606 = vmatprep.subr.mxu0 0.0
    %607 = vmatpush2.xpose.msra.mxu0 0.0
    %608 = vmatprep.subr.mxu0 0.0
    %609 = vmatpush2.xpose.msra.mxu0 0.0
    %610 = vmatprep.subr.mxu0 0.0
    %611 = vmatpush2.xpose.msra.mxu0 0.0
    %612 = vmatprep.subr.mxu0 0.0
    %613 = vmatpush2.xpose.msra.mxu0 0.0
    %614 = vmatprep.subr.mxu0 0.0
    %615 = vmatpush2.xpose.msra.mxu0 0.0
    %616 = vmatprep.subr.mxu0 0.0
    %617 = vmatpush2.xpose.msra.mxu0 0.0
    %618 = vmatprep.subr.mxu0 0.0
    %619 = vmatpush2.xpose.msra.mxu0 0.0
    %620 = vmatprep.mubr.f32.mxu0 0.0
    %621 = vmatmul.mubr.f32.gmra.mxu0 %v552
    %v622 = vpop.f32.mrf.mxu0
    %v623 = vadd.f32 %v224, %v622
    %v624 = vpop.f32.mrf.mxu0
    %625 = vdwg.mxu0
    %626 = vrot.lane.b32.xlu0 %v218, 120
    %v627 = vpop.permute.xlu0 %626
    %628 = vrot.lane.b32.xlu0 %v218, 88
    %v629 = vpop.permute.xlu0 %628
    %v630 = vsel %vm228, %v627, 0
    %v632 = vsel %vm228, %v629, 0
    %634 = vmatprep.subr.mxu0 0.0
    %635 = vmatpush1.xpose.msra.mxu0 0.0
    %636 = vmatprep.subr.mxu0 0.0
    %637 = vmatpush1.xpose.msra.mxu0 0.0
    %638 = vmatprep.subr.mxu0 0.0
    %639 = vmatpush1.xpose.msra.mxu0 0.0
    %640 = vmatprep.subr.mxu0 0.0
    %641 = vmatpush1.xpose.msra.mxu0 0.0
    %642 = vmatprep.subr.mxu0 0.0
    %643 = vmatpush1.xpose.msra.mxu0 0.0
    %644 = vmatprep.subr.mxu0 0.0
    %645 = vmatpush1.xpose.msra.mxu0 0.0
    %646 = vmatprep.subr.mxu0 0.0
    %647 = vmatpush1.xpose.msra.mxu0 0.0
    %648 = vmatprep.subr.mxu0 0.0
    %649 = vmatpush1.xpose.msra.mxu0 0.0
    %650 = vmatprep.subr.mxu0 0.0
    %651 = vmatpush1.xpose.msra.mxu0 0.0
    %652 = vmatprep.subr.mxu0 0.0
    %653 = vmatpush1.xpose.msra.mxu0 0.0
    %654 = vmatprep.subr.mxu0 0.0
    %655 = vmatpush1.xpose.msra.mxu0 0.0
    %656 = vmatprep.subr.mxu0 0.0
    %657 = vmatpush1.xpose.msra.mxu0 0.0
    %658 = vmatprep.subr.mxu0 0.0
    %659 = vmatpush1.xpose.msra.mxu0 0.0
    %660 = vmatprep.subr.mxu0 0.0
    %661 = vmatpush1.xpose.msra.mxu0 0.0
    %662 = vmatprep.subr.mxu0 0.0
    %663 = vmatpush1.xpose.msra.mxu0 0.0
    %664 = vmatprep.subr.mxu0 0.0
    %665 = vmatpush1.xpose.msra.mxu0 %v632
    %666 = vmatprep.subr.mxu0 0.0
    %667 = vmatpush2.xpose.msra.mxu0 0.0
    %668 = vmatprep.subr.mxu0 0.0
    %669 = vmatpush2.xpose.msra.mxu0 0.0
    %670 = vmatprep.subr.mxu0 0.0
    %671 = vmatpush2.xpose.msra.mxu0 0.0
    %672 = vmatprep.subr.mxu0 0.0
    %673 = vmatpush2.xpose.msra.mxu0 0.0
    %674 = vmatprep.subr.mxu0 0.0
    %675 = vmatpush2.xpose.msra.mxu0 0.0
    %676 = vmatprep.subr.mxu0 0.0
    %677 = vmatpush2.xpose.msra.mxu0 0.0
    %678 = vmatprep.subr.mxu0 0.0
    %679 = vmatpush2.xpose.msra.mxu0 0.0
    %680 = vmatprep.subr.mxu0 0.0
    %681 = vmatpush2.xpose.msra.mxu0 0.0
    %682 = vmatprep.subr.mxu0 0.0
    %683 = vmatpush2.xpose.msra.mxu0 0.0
    %684 = vmatprep.subr.mxu0 0.0
    %685 = vmatpush2.xpose.msra.mxu0 0.0
    %686 = vmatprep.subr.mxu0 0.0
    %687 = vmatpush2.xpose.msra.mxu0 0.0
    %688 = vmatprep.subr.mxu0 0.0
    %689 = vmatpush2.xpose.msra.mxu0 0.0
    %690 = vmatprep.subr.mxu0 0.0
    %691 = vmatpush2.xpose.msra.mxu0 0.0
    %692 = vmatprep.subr.mxu0 0.0
    %693 = vmatpush2.xpose.msra.mxu0 0.0
    %694 = vmatprep.subr.mxu0 0.0
    %695 = vmatpush2.xpose.msra.mxu0 0.0
    %696 = vmatprep.subr.mxu0 0.0
    %697 = vmatpush2.xpose.msra.mxu0 0.0
    %698 = vmatprep.mubr.f32.mxu0 0.0
    %699 = vmatmul.mubr.f32.gmra.mxu0 %v630
    %v700 = vpop.f32.mrf.mxu0
    %v701 = vadd.f32 %v224, %v700
    %v702 = vpop.f32.mrf.mxu0
    %703 = vdwg.mxu0
    %v704 = vsel %vm228, %v623, -inf
    %705 = vmax.xlane.f32.xlu0 %v704
    %v706 = vpop.xlane.xlu0 %705
    %v707 = vsel %vm228, %v701, -inf
    %708 = vmax.xlane.f32.xlu0 %v707
    %v709 = vpop.xlane.xlu0 %708
    %v710 = vsub.f32 %v623, %v706
    %v711 = vsub.f32 %v701, %v709
    %v712 = vmul.f32 %v710, 1.442695
    %v713 = vpow.pop %v712
    %v714 = vmul.f32 %v711, 1.442695
    %v715 = vpow.pop %v714
    %v716 = vsel %vm228, %v713, 0.0
    %717 = vadd.xlane.f32.xlu0 %v716
    %v718 = vpop.xlane.xlu0 %717
    %v719 = vsel %vm228, %v715, 0.0
    %720 = vadd.xlane.f32.xlu0 %v719
    %v721 = vpop.xlane.xlu0 %720
    %v722 = vrcp.pop %v718
    %v723 = vrcp.pop %v721
    %v724 = vmul.f32 %v713, %v722
    %v725 = vmul.f32 %v715, %v723
    %727 = vrot.lane.b32.xlu0 %v185, 120
    %v728 = vpop.permute.xlu0 %727
    %v731 = vsel %vm228, %v724, 0
    %733 = vmatprep.subr.mxu0 0.0
    %734 = vmatpush1.msra.mxu0 0.0
    %735 = vmatprep.subr.mxu0 0.0
    %736 = vmatpush1.msra.mxu0 0.0
    %737 = vmatprep.subr.mxu0 0.0
    %738 = vmatpush1.msra.mxu0 0.0
    %739 = vmatprep.subr.mxu0 0.0
    %740 = vmatpush1.msra.mxu0 0.0
    %741 = vmatprep.subr.mxu0 0.0
    %742 = vmatpush1.msra.mxu0 0.0
    %743 = vmatprep.subr.mxu0 0.0
    %744 = vmatpush1.msra.mxu0 0.0
    %745 = vmatprep.subr.mxu0 0.0
    %746 = vmatpush1.msra.mxu0 0.0
    %747 = vmatprep.subr.mxu0 0.0
    %748 = vmatpush1.msra.mxu0 0.0
    %749 = vmatprep.subr.mxu0 0.0
    %750 = vmatpush1.msra.mxu0 0.0
    %751 = vmatprep.subr.mxu0 0.0
    %752 = vmatpush1.msra.mxu0 0.0
    %753 = vmatprep.subr.mxu0 0.0
    %754 = vmatpush1.msra.mxu0 0.0
    %755 = vmatprep.subr.mxu0 0.0
    %756 = vmatpush1.msra.mxu0 0.0
    %757 = vmatprep.subr.mxu0 0.0
    %758 = vmatpush1.msra.mxu0 0.0
    %759 = vmatprep.subr.mxu0 0.0
    %760 = vmatpush1.msra.mxu0 0.0
    %761 = vmatprep.subr.mxu0 0.0
    %762 = vmatpush1.msra.mxu0 0.0
    %763 = vmatprep.subr.mxu0 0.0
    %764 = vmatpush1.msra.mxu0 %v728
    %765 = vmatprep.subr.mxu0 0.0
    %766 = vmatpush2.msra.mxu0 0.0
    %767 = vmatprep.subr.mxu0 0.0
    %768 = vmatpush2.msra.mxu0 0.0
    %769 = vmatprep.subr.mxu0 0.0
    %770 = vmatpush2.msra.mxu0 0.0
    %771 = vmatprep.subr.mxu0 0.0
    %772 = vmatpush2.msra.mxu0 0.0
    %773 = vmatprep.subr.mxu0 0.0
    %774 = vmatpush2.msra.mxu0 0.0
    %775 = vmatprep.subr.mxu0 0.0
    %776 = vmatpush2.msra.mxu0 0.0
    %777 = vmatprep.subr.mxu0 0.0
    %778 = vmatpush2.msra.mxu0 0.0
    %779 = vmatprep.subr.mxu0 0.0
    %780 = vmatpush2.msra.mxu0 0.0
    %781 = vmatprep.subr.mxu0 0.0
    %782 = vmatpush2.msra.mxu0 0.0
    %783 = vmatprep.subr.mxu0 0.0
    %784 = vmatpush2.msra.mxu0 0.0
    %785 = vmatprep.subr.mxu0 0.0
    %786 = vmatpush2.msra.mxu0 0.0
    %787 = vmatprep.subr.mxu0 0.0
    %788 = vmatpush2.msra.mxu0 0.0
    %789 = vmatprep.subr.mxu0 0.0
    %790 = vmatpush2.msra.mxu0 0.0
    %791 = vmatprep.subr.mxu0 0.0
    %792 = vmatpush2.msra.mxu0 0.0
    %793 = vmatprep.subr.mxu0 0.0
    %794 = vmatpush2.msra.mxu0 0.0
    %795 = vmatprep.subr.mxu0 0.0
    %796 = vmatpush2.msra.mxu0 0.0
    %797 = vmatprep.mubr.f32.mxu0 0.0
    %798 = vmatmul.mubr.f32.gmra.mxu0 %v731
    %v799 = vpop.f32.mrf.mxu0
    %v800 = vadd.f32 0.0, %v799
    %v801 = vpop.f32.mrf.mxu0
    %802 = vdwg.mxu0
    %804 = vrot.lane.b32.xlu0 %v191, 120
    %v805 = vpop.permute.xlu0 %804
    %v808 = vsel %vm228, %v725, 0
    %810 = vmatprep.subr.mxu0 0.0
    %811 = vmatpush1.msra.mxu0 0.0
    %812 = vmatprep.subr.mxu0 0.0
    %813 = vmatpush1.msra.mxu0 0.0
    %814 = vmatprep.subr.mxu0 0.0
    %815 = vmatpush1.msra.mxu0 0.0
    %816 = vmatprep.subr.mxu0 0.0
    %817 = vmatpush1.msra.mxu0 0.0
    %818 = vmatprep.subr.mxu0 0.0
    %819 = vmatpush1.msra.mxu0 0.0
    %820 = vmatprep.subr.mxu0 0.0
    %821 = vmatpush1.msra.mxu0 0.0
    %822 = vmatprep.subr.mxu0 0.0
    %823 = vmatpush1.msra.mxu0 0.0
    %824 = vmatprep.subr.mxu0 0.0
    %825 = vmatpush1.msra.mxu0 0.0
    %826 = vmatprep.subr.mxu0 0.0
    %827 = vmatpush1.msra.mxu0 0.0
    %828 = vmatprep.subr.mxu0 0.0
    %829 = vmatpush1.msra.mxu0 0.0
    %830 = vmatprep.subr.mxu0 0.0
    %831 = vmatpush1.msra.mxu0 0.0
    %832 = vmatprep.subr.mxu0 0.0
    %833 = vmatpush1.msra.mxu0 0.0
    %834 = vmatprep.subr.mxu0 0.0
    %835 = vmatpush1.msra.mxu0 0.0
    %836 = vmatprep.subr.mxu0 0.0
    %837 = vmatpush1.msra.mxu0 0.0
    %838 = vmatprep.subr.mxu0 0.0
    %839 = vmatpush1.msra.mxu0 0.0
    %840 = vmatprep.subr.mxu0 0.0
    %841 = vmatpush1.msra.mxu0 %v805
    %842 = vmatprep.subr.mxu0 0.0
    %843 = vmatpush2.msra.mxu0 0.0
    %844 = vmatprep.subr.mxu0 0.0
    %845 = vmatpush2.msra.mxu0 0.0
    %846 = vmatprep.subr.mxu0 0.0
    %847 = vmatpush2.msra.mxu0 0.0
    %848 = vmatprep.subr.mxu0 0.0
    %849 = vmatpush2.msra.mxu0 0.0
    %850 = vmatprep.subr.mxu0 0.0
    %851 = vmatpush2.msra.mxu0 0.0
    %852 = vmatprep.subr.mxu0 0.0
    %853 = vmatpush2.msra.mxu0 0.0
    %854 = vmatprep.subr.mxu0 0.0
    %855 = vmatpush2.msra.mxu0 0.0
    %856 = vmatprep.subr.mxu0 0.0
    %857 = vmatpush2.msra.mxu0 0.0
    %858 = vmatprep.subr.mxu0 0.0
    %859 = vmatpush2.msra.mxu0 0.0
    %860 = vmatprep.subr.mxu0 0.0
    %861 = vmatpush2.msra.mxu0 0.0
    %862 = vmatprep.subr.mxu0 0.0
    %863 = vmatpush2.msra.mxu0 0.0
    %864 = vmatprep.subr.mxu0 0.0
    %865 = vmatpush2.msra.mxu0 0.0
    %866 = vmatprep.subr.mxu0 0.0
    %867 = vmatpush2.msra.mxu0 0.0
    %868 = vmatprep.subr.mxu0 0.0
    %869 = vmatpush2.msra.mxu0 0.0
    %870 = vmatprep.subr.mxu0 0.0
    %871 = vmatpush2.msra.mxu0 0.0
    %872 = vmatprep.subr.mxu0 0.0
    %873 = vmatpush2.msra.mxu0 0.0
    %874 = vmatprep.mubr.f32.mxu0 0.0
    %875 = vmatmul.mubr.f32.gmra.mxu0 %v808
    %v876 = vpop.f32.mrf.mxu0
    %v877 = vadd.f32 0.0, %v876
    %v878 = vpop.f32.mrf.mxu0
    %879 = vdwg.mxu0
    %880 = vrot.lane.b32.xlu0 %v217, 112
    %v881 = vpop.permute.xlu0 %880
    %882 = vrot.lane.b32.xlu0 %v217, 80
    %v883 = vpop.permute.xlu0 %882
    %v884 = vsel %vm228, %v881, 0
    %v886 = vsel %vm228, %v883, 0
    %888 = vmatprep.subr.mxu0 0.0
    %889 = vmatpush1.xpose.msra.mxu0 0.0
    %890 = vmatprep.subr.mxu0 0.0
    %891 = vmatpush1.xpose.msra.mxu0 0.0
    %892 = vmatprep.subr.mxu0 0.0
    %893 = vmatpush1.xpose.msra.mxu0 0.0
    %894 = vmatprep.subr.mxu0 0.0
    %895 = vmatpush1.xpose.msra.mxu0 0.0
    %896 = vmatprep.subr.mxu0 0.0
    %897 = vmatpush1.xpose.msra.mxu0 0.0
    %898 = vmatprep.subr.mxu0 0.0
    %899 = vmatpush1.xpose.msra.mxu0 0.0
    %900 = vmatprep.subr.mxu0 0.0
    %901 = vmatpush1.xpose.msra.mxu0 0.0
    %902 = vmatprep.subr.mxu0 0.0
    %903 = vmatpush1.xpose.msra.mxu0 0.0
    %904 = vmatprep.subr.mxu0 0.0
    %905 = vmatpush1.xpose.msra.mxu0 0.0
    %906 = vmatprep.subr.mxu0 0.0
    %907 = vmatpush1.xpose.msra.mxu0 0.0
    %908 = vmatprep.subr.mxu0 0.0
    %909 = vmatpush1.xpose.msra.mxu0 0.0
    %910 = vmatprep.subr.mxu0 0.0
    %911 = vmatpush1.xpose.msra.mxu0 0.0
    %912 = vmatprep.subr.mxu0 0.0
    %913 = vmatpush1.xpose.msra.mxu0 0.0
    %914 = vmatprep.subr.mxu0 0.0
    %915 = vmatpush1.xpose.msra.mxu0 0.0
    %916 = vmatprep.subr.mxu0 0.0
    %917 = vmatpush1.xpose.msra.mxu0 0.0
    %918 = vmatprep.subr.mxu0 0.0
    %919 = vmatpush1.xpose.msra.mxu0 %v886
    %920 = vmatprep.subr.mxu0 0.0
    %921 = vmatpush2.xpose.msra.mxu0 0.0
    %922 = vmatprep.subr.mxu0 0.0
    %923 = vmatpush2.xpose.msra.mxu0 0.0
    %924 = vmatprep.subr.mxu0 0.0
    %925 = vmatpush2.xpose.msra.mxu0 0.0
    %926 = vmatprep.subr.mxu0 0.0
    %927 = vmatpush2.xpose.msra.mxu0 0.0
    %928 = vmatprep.subr.mxu0 0.0
    %929 = vmatpush2.xpose.msra.mxu0 0.0
    %930 = vmatprep.subr.mxu0 0.0
    %931 = vmatpush2.xpose.msra.mxu0 0.0
    %932 = vmatprep.subr.mxu0 0.0
    %933 = vmatpush2.xpose.msra.mxu0 0.0
    %934 = vmatprep.subr.mxu0 0.0
    %935 = vmatpush2.xpose.msra.mxu0 0.0
    %936 = vmatprep.subr.mxu0 0.0
    %937 = vmatpush2.xpose.msra.mxu0 0.0
    %938 = vmatprep.subr.mxu0 0.0
    %939 = vmatpush2.xpose.msra.mxu0 0.0
    %940 = vmatprep.subr.mxu0 0.0
    %941 = vmatpush2.xpose.msra.mxu0 0.0
    %942 = vmatprep.subr.mxu0 0.0
    %943 = vmatpush2.xpose.msra.mxu0 0.0
    %944 = vmatprep.subr.mxu0 0.0
    %945 = vmatpush2.xpose.msra.mxu0 0.0
    %946 = vmatprep.subr.mxu0 0.0
    %947 = vmatpush2.xpose.msra.mxu0 0.0
    %948 = vmatprep.subr.mxu0 0.0
    %949 = vmatpush2.xpose.msra.mxu0 0.0
    %950 = vmatprep.subr.mxu0 0.0
    %951 = vmatpush2.xpose.msra.mxu0 0.0
    %952 = vmatprep.mubr.f32.mxu0 0.0
    %953 = vmatmul.mubr.f32.gmra.mxu0 %v884
    %v954 = vpop.f32.mrf.mxu0
    %v955 = vadd.f32 %v224, %v954
    %v956 = vpop.f32.mrf.mxu0
    %957 = vdwg.mxu0
    %958 = vrot.lane.b32.xlu0 %v218, 112
    %v959 = vpop.permute.xlu0 %958
    %960 = vrot.lane.b32.xlu0 %v218, 80
    %v961 = vpop.permute.xlu0 %960
    %v962 = vsel %vm228, %v959, 0
    %v964 = vsel %vm228, %v961, 0
    %966 = vmatprep.subr.mxu0 0.0
    %967 = vmatpush1.xpose.msra.mxu0 0.0
    %968 = vmatprep.subr.mxu0 0.0
    %969 = vmatpush1.xpose.msra.mxu0 0.0
    %970 = vmatprep.subr.mxu0 0.0
    %971 = vmatpush1.xpose.msra.mxu0 0.0
    %972 = vmatprep.subr.mxu0 0.0
    %973 = vmatpush1.xpose.msra.mxu0 0.0
    %974 = vmatprep.subr.mxu0 0.0
    %975 = vmatpush1.xpose.msra.mxu0 0.0
    %976 = vmatprep.subr.mxu0 0.0
    %977 = vmatpush1.xpose.msra.mxu0 0.0
    %978 = vmatprep.subr.mxu0 0.0
    %979 = vmatpush1.xpose.msra.mxu0 0.0
    %980 = vmatprep.subr.mxu0 0.0
    %981 = vmatpush1.xpose.msra.mxu0 0.0
    %982 = vmatprep.subr.mxu0 0.0
    %983 = vmatpush1.xpose.msra.mxu0 0.0
    %984 = vmatprep.subr.mxu0 0.0
    %985 = vmatpush1.xpose.msra.mxu0 0.0
    %986 = vmatprep.subr.mxu0 0.0
    %987 = vmatpush1.xpose.msra.mxu0 0.0
    %988 = vmatprep.subr.mxu0 0.0
    %989 = vmatpush1.xpose.msra.mxu0 0.0
    %990 = vmatprep.subr.mxu0 0.0
    %991 = vmatpush1.xpose.msra.mxu0 0.0
    %992 = vmatprep.subr.mxu0 0.0
    %993 = vmatpush1.xpose.msra.mxu0 0.0
    %994 = vmatprep.subr.mxu0 0.0
    %995 = vmatpush1.xpose.msra.mxu0 0.0
    %996 = vmatprep.subr.mxu0 0.0
    %997 = vmatpush1.xpose.msra.mxu0 %v964
    %998 = vmatprep.subr.mxu0 0.0
    %999 = vmatpush2.xpose.msra.mxu0 0.0
    %1000 = vmatprep.subr.mxu0 0.0
    %1001 = vmatpush2.xpose.msra.mxu0 0.0
    %1002 = vmatprep.subr.mxu0 0.0
    %1003 = vmatpush2.xpose.msra.mxu0 0.0
    %1004 = vmatprep.subr.mxu0 0.0
    %1005 = vmatpush2.xpose.msra.mxu0 0.0
    %1006 = vmatprep.subr.mxu0 0.0
    %1007 = vmatpush2.xpose.msra.mxu0 0.0
    %1008 = vmatprep.subr.mxu0 0.0
    %1009 = vmatpush2.xpose.msra.mxu0 0.0
    %1010 = vmatprep.subr.mxu0 0.0
    %1011 = vmatpush2.xpose.msra.mxu0 0.0
    %1012 = vmatprep.subr.mxu0 0.0
    %1013 = vmatpush2.xpose.msra.mxu0 0.0
    %1014 = vmatprep.subr.mxu0 0.0
    %1015 = vmatpush2.xpose.msra.mxu0 0.0
    %1016 = vmatprep.subr.mxu0 0.0
    %1017 = vmatpush2.xpose.msra.mxu0 0.0
    %1018 = vmatprep.subr.mxu0 0.0
    %1019 = vmatpush2.xpose.msra.mxu0 0.0
    %1020 = vmatprep.subr.mxu0 0.0
    %1021 = vmatpush2.xpose.msra.mxu0 0.0
    %1022 = vmatprep.subr.mxu0 0.0
    %1023 = vmatpush2.xpose.msra.mxu0 0.0
    %1024 = vmatprep.subr.mxu0 0.0
    %1025 = vmatpush2.xpose.msra.mxu0 0.0
    %1026 = vmatprep.subr.mxu0 0.0
    %1027 = vmatpush2.xpose.msra.mxu0 0.0
    %1028 = vmatprep.subr.mxu0 0.0
    %1029 = vmatpush2.xpose.msra.mxu0 0.0
    %1030 = vmatprep.mubr.f32.mxu0 0.0
    %1031 = vmatmul.mubr.f32.gmra.mxu0 %v962
    %v1032 = vpop.f32.mrf.mxu0
    %v1033 = vadd.f32 %v224, %v1032
    %v1034 = vpop.f32.mrf.mxu0
    %1035 = vdwg.mxu0
    %v1036 = vsel %vm228, %v955, -inf
    %1037 = vmax.xlane.f32.xlu0 %v1036
    %v1038 = vpop.xlane.xlu0 %1037
    %v1039 = vsel %vm228, %v1033, -inf
    %1040 = vmax.xlane.f32.xlu0 %v1039
    %v1041 = vpop.xlane.xlu0 %1040
    %v1042 = vsub.f32 %v955, %v1038
    %v1043 = vsub.f32 %v1033, %v1041
    %v1044 = vmul.f32 %v1042, 1.442695
    %v1045 = vpow.pop %v1044
    %v1046 = vmul.f32 %v1043, 1.442695
    %v1047 = vpow.pop %v1046
    %v1048 = vsel %vm228, %v1045, 0.0
    %1049 = vadd.xlane.f32.xlu0 %v1048
    %v1050 = vpop.xlane.xlu0 %1049
    %v1051 = vsel %vm228, %v1047, 0.0
    %1052 = vadd.xlane.f32.xlu0 %v1051
    %v1053 = vpop.xlane.xlu0 %1052
    %v1054 = vrcp.pop %v1050
    %v1055 = vrcp.pop %v1053
    %v1056 = vmul.f32 %v1045, %v1054
    %v1057 = vmul.f32 %v1047, %v1055
    %1058 = vrot.lane.b32.xlu0 %v185, 112
    %v1059 = vpop.permute.xlu0 %1058
    %v1062 = vsel %vm228, %v1056, 0
    %1064 = vmatprep.subr.mxu0 0.0
    %1065 = vmatpush1.msra.mxu0 0.0
    %1066 = vmatprep.subr.mxu0 0.0
    %1067 = vmatpush1.msra.mxu0 0.0
    %1068 = vmatprep.subr.mxu0 0.0
    %1069 = vmatpush1.msra.mxu0 0.0
    %1070 = vmatprep.subr.mxu0 0.0
    %1071 = vmatpush1.msra.mxu0 0.0
    %1072 = vmatprep.subr.mxu0 0.0
    %1073 = vmatpush1.msra.mxu0 0.0
    %1074 = vmatprep.subr.mxu0 0.0
    %1075 = vmatpush1.msra.mxu0 0.0
    %1076 = vmatprep.subr.mxu0 0.0
    %1077 = vmatpush1.msra.mxu0 0.0
    %1078 = vmatprep.subr.mxu0 0.0
    %1079 = vmatpush1.msra.mxu0 0.0
    %1080 = vmatprep.subr.mxu0 0.0
    %1081 = vmatpush1.msra.mxu0 0.0
    %1082 = vmatprep.subr.mxu0 0.0
    %1083 = vmatpush1.msra.mxu0 0.0
    %1084 = vmatprep.subr.mxu0 0.0
    %1085 = vmatpush1.msra.mxu0 0.0
    %1086 = vmatprep.subr.mxu0 0.0
    %1087 = vmatpush1.msra.mxu0 0.0
    %1088 = vmatprep.subr.mxu0 0.0
    %1089 = vmatpush1.msra.mxu0 0.0
    %1090 = vmatprep.subr.mxu0 0.0
    %1091 = vmatpush1.msra.mxu0 0.0
    %1092 = vmatprep.subr.mxu0 0.0
    %1093 = vmatpush1.msra.mxu0 0.0
    %1094 = vmatprep.subr.mxu0 0.0
    %1095 = vmatpush1.msra.mxu0 %v1059
    %1096 = vmatprep.subr.mxu0 0.0
    %1097 = vmatpush2.msra.mxu0 0.0
    %1098 = vmatprep.subr.mxu0 0.0
    %1099 = vmatpush2.msra.mxu0 0.0
    %1100 = vmatprep.subr.mxu0 0.0
    %1101 = vmatpush2.msra.mxu0 0.0
    %1102 = vmatprep.subr.mxu0 0.0
    %1103 = vmatpush2.msra.mxu0 0.0
    %1104 = vmatprep.subr.mxu0 0.0
    %1105 = vmatpush2.msra.mxu0 0.0
    %1106 = vmatprep.subr.mxu0 0.0
    %1107 = vmatpush2.msra.mxu0 0.0
    %1108 = vmatprep.subr.mxu0 0.0
    %1109 = vmatpush2.msra.mxu0 0.0
    %1110 = vmatprep.subr.mxu0 0.0
    %1111 = vmatpush2.msra.mxu0 0.0
    %1112 = vmatprep.subr.mxu0 0.0
    %1113 = vmatpush2.msra.mxu0 0.0
    %1114 = vmatprep.subr.mxu0 0.0
    %1115 = vmatpush2.msra.mxu0 0.0
    %1116 = vmatprep.subr.mxu0 0.0
    %1117 = vmatpush2.msra.mxu0 0.0
    %1118 = vmatprep.subr.mxu0 0.0
    %1119 = vmatpush2.msra.mxu0 0.0
    %1120 = vmatprep.subr.mxu0 0.0
    %1121 = vmatpush2.msra.mxu0 0.0
    %1122 = vmatprep.subr.mxu0 0.0
    %1123 = vmatpush2.msra.mxu0 0.0
    %1124 = vmatprep.subr.mxu0 0.0
    %1125 = vmatpush2.msra.mxu0 0.0
    %1126 = vmatprep.subr.mxu0 0.0
    %1127 = vmatpush2.msra.mxu0 0.0
    %1128 = vmatprep.mubr.f32.mxu0 0.0
    %1129 = vmatmul.mubr.f32.gmra.mxu0 %v1062
    %v1130 = vpop.f32.mrf.mxu0
    %v1131 = vadd.f32 0.0, %v1130
    %v1132 = vpop.f32.mrf.mxu0
    %1133 = vdwg.mxu0
    %1134 = vrot.lane.b32.xlu0 %v191, 112
    %v1135 = vpop.permute.xlu0 %1134
    %v1138 = vsel %vm228, %v1057, 0
    %1140 = vmatprep.subr.mxu0 0.0
    %1141 = vmatpush1.msra.mxu0 0.0
    %1142 = vmatprep.subr.mxu0 0.0
    %1143 = vmatpush1.msra.mxu0 0.0
    %1144 = vmatprep.subr.mxu0 0.0
    %1145 = vmatpush1.msra.mxu0 0.0
    %1146 = vmatprep.subr.mxu0 0.0
    %1147 = vmatpush1.msra.mxu0 0.0
    %1148 = vmatprep.subr.mxu0 0.0
    %1149 = vmatpush1.msra.mxu0 0.0
    %1150 = vmatprep.subr.mxu0 0.0
    %1151 = vmatpush1.msra.mxu0 0.0
    %1152 = vmatprep.subr.mxu0 0.0
    %1153 = vmatpush1.msra.mxu0 0.0
    %1154 = vmatprep.subr.mxu0 0.0
    %1155 = vmatpush1.msra.mxu0 0.0
    %1156 = vmatprep.subr.mxu0 0.0
    %1157 = vmatpush1.msra.mxu0 0.0
    %1158 = vmatprep.subr.mxu0 0.0
    %1159 = vmatpush1.msra.mxu0 0.0
    %1160 = vmatprep.subr.mxu0 0.0
    %1161 = vmatpush1.msra.mxu0 0.0
    %1162 = vmatprep.subr.mxu0 0.0
    %1163 = vmatpush1.msra.mxu0 0.0
    %1164 = vmatprep.subr.mxu0 0.0
    %1165 = vmatpush1.msra.mxu0 0.0
    %1166 = vmatprep.subr.mxu0 0.0
    %1167 = vmatpush1.msra.mxu0 0.0
    %1168 = vmatprep.subr.mxu0 0.0
    %1169 = vmatpush1.msra.mxu0 0.0
    %1170 = vmatprep.subr.mxu0 0.0
    %1171 = vmatpush1.msra.mxu0 %v1135
    %1172 = vmatprep.subr.mxu0 0.0
    %1173 = vmatpush2.msra.mxu0 0.0
    %1174 = vmatprep.subr.mxu0 0.0
    %1175 = vmatpush2.msra.mxu0 0.0
    %1176 = vmatprep.subr.mxu0 0.0
    %1177 = vmatpush2.msra.mxu0 0.0
    %1178 = vmatprep.subr.mxu0 0.0
    %1179 = vmatpush2.msra.mxu0 0.0
    %1180 = vmatprep.subr.mxu0 0.0
    %1181 = vmatpush2.msra.mxu0 0.0
    %1182 = vmatprep.subr.mxu0 0.0
    %1183 = vmatpush2.msra.mxu0 0.0
    %1184 = vmatprep.subr.mxu0 0.0
    %1185 = vmatpush2.msra.mxu0 0.0
    %1186 = vmatprep.subr.mxu0 0.0
    %1187 = vmatpush2.msra.mxu0 0.0
    %1188 = vmatprep.subr.mxu0 0.0
    %1189 = vmatpush2.msra.mxu0 0.0
    %1190 = vmatprep.subr.mxu0 0.0
    %1191 = vmatpush2.msra.mxu0 0.0
    %1192 = vmatprep.subr.mxu0 0.0
    %1193 = vmatpush2.msra.mxu0 0.0
    %1194 = vmatprep.subr.mxu0 0.0
    %1195 = vmatpush2.msra.mxu0 0.0
    %1196 = vmatprep.subr.mxu0 0.0
    %1197 = vmatpush2.msra.mxu0 0.0
    %1198 = vmatprep.subr.mxu0 0.0
    %1199 = vmatpush2.msra.mxu0 0.0
    %1200 = vmatprep.subr.mxu0 0.0
    %1201 = vmatpush2.msra.mxu0 0.0
    %1202 = vmatprep.subr.mxu0 0.0
    %1203 = vmatpush2.msra.mxu0 0.0
    %1204 = vmatprep.mubr.f32.mxu0 0.0
    %1205 = vmatmul.mubr.f32.gmra.mxu0 %v1138
    %v1206 = vpop.f32.mrf.mxu0
    %v1207 = vadd.f32 0.0, %v1206
    %v1208 = vpop.f32.mrf.mxu0
    %1209 = vdwg.mxu0
    %1210 = vrot.lane.b32.xlu0 %v217, 104
    %v1211 = vpop.permute.xlu0 %1210
    %1212 = vrot.lane.b32.xlu0 %v217, 72
    %v1213 = vpop.permute.xlu0 %1212
    %v1214 = vsel %vm228, %v1211, 0
    %v1216 = vsel %vm228, %v1213, 0
    %1218 = vmatprep.subr.mxu0 0.0
    %1219 = vmatpush1.xpose.msra.mxu0 0.0
    %1220 = vmatprep.subr.mxu0 0.0
    %1221 = vmatpush1.xpose.msra.mxu0 0.0
    %1222 = vmatprep.subr.mxu0 0.0
    %1223 = vmatpush1.xpose.msra.mxu0 0.0
    %1224 = vmatprep.subr.mxu0 0.0
    %1225 = vmatpush1.xpose.msra.mxu0 0.0
    %1226 = vmatprep.subr.mxu0 0.0
    %1227 = vmatpush1.xpose.msra.mxu0 0.0
    %1228 = vmatprep.subr.mxu0 0.0
    %1229 = vmatpush1.xpose.msra.mxu0 0.0
    %1230 = vmatprep.subr.mxu0 0.0
    %1231 = vmatpush1.xpose.msra.mxu0 0.0
    %1232 = vmatprep.subr.mxu0 0.0
    %1233 = vmatpush1.xpose.msra.mxu0 0.0
    %1234 = vmatprep.subr.mxu0 0.0
    %1235 = vmatpush1.xpose.msra.mxu0 0.0
    %1236 = vmatprep.subr.mxu0 0.0
    %1237 = vmatpush1.xpose.msra.mxu0 0.0
    %1238 = vmatprep.subr.mxu0 0.0
    %1239 = vmatpush1.xpose.msra.mxu0 0.0
    %1240 = vmatprep.subr.mxu0 0.0
    %1241 = vmatpush1.xpose.msra.mxu0 0.0
    %1242 = vmatprep.subr.mxu0 0.0
    %1243 = vmatpush1.xpose.msra.mxu0 0.0
    %1244 = vmatprep.subr.mxu0 0.0
    %1245 = vmatpush1.xpose.msra.mxu0 0.0
    %1246 = vmatprep.subr.mxu0 0.0
    %1247 = vmatpush1.xpose.msra.mxu0 0.0
    %1248 = vmatprep.subr.mxu0 0.0
    %1249 = vmatpush1.xpose.msra.mxu0 %v1216
    %1250 = vmatprep.subr.mxu0 0.0
    %1251 = vmatpush2.xpose.msra.mxu0 0.0
    %1252 = vmatprep.subr.mxu0 0.0
    %1253 = vmatpush2.xpose.msra.mxu0 0.0
    %1254 = vmatprep.subr.mxu0 0.0
    %1255 = vmatpush2.xpose.msra.mxu0 0.0
    %1256 = vmatprep.subr.mxu0 0.0
    %1257 = vmatpush2.xpose.msra.mxu0 0.0
    %1258 = vmatprep.subr.mxu0 0.0
    %1259 = vmatpush2.xpose.msra.mxu0 0.0
    %1260 = vmatprep.subr.mxu0 0.0
    %1261 = vmatpush2.xpose.msra.mxu0 0.0
    %1262 = vmatprep.subr.mxu0 0.0
    %1263 = vmatpush2.xpose.msra.mxu0 0.0
    %1264 = vmatprep.subr.mxu0 0.0
    %1265 = vmatpush2.xpose.msra.mxu0 0.0
    %1266 = vmatprep.subr.mxu0 0.0
    %1267 = vmatpush2.xpose.msra.mxu0 0.0
    %1268 = vmatprep.subr.mxu0 0.0
    %1269 = vmatpush2.xpose.msra.mxu0 0.0
    %1270 = vmatprep.subr.mxu0 0.0
    %1271 = vmatpush2.xpose.msra.mxu0 0.0
    %1272 = vmatprep.subr.mxu0 0.0
    %1273 = vmatpush2.xpose.msra.mxu0 0.0
    %1274 = vmatprep.subr.mxu0 0.0
    %1275 = vmatpush2.xpose.msra.mxu0 0.0
    %1276 = vmatprep.subr.mxu0 0.0
    %1277 = vmatpush2.xpose.msra.mxu0 0.0
    %1278 = vmatprep.subr.mxu0 0.0
    %1279 = vmatpush2.xpose.msra.mxu0 0.0
    %1280 = vmatprep.subr.mxu0 0.0
    %1281 = vmatpush2.xpose.msra.mxu0 0.0
    %1282 = vmatprep.mubr.f32.mxu0 0.0
    %1283 = vmatmul.mubr.f32.gmra.mxu0 %v1214
    %v1284 = vpop.f32.mrf.mxu0
    %v1285 = vadd.f32 %v224, %v1284
    %v1286 = vpop.f32.mrf.mxu0
    %1287 = vdwg.mxu0
    %1288 = vrot.lane.b32.xlu0 %v218, 104
    %v1289 = vpop.permute.xlu0 %1288
    %1290 = vrot.lane.b32.xlu0 %v218, 72
    %v1291 = vpop.permute.xlu0 %1290
    %v1292 = vsel %vm228, %v1289, 0
    %v1294 = vsel %vm228, %v1291, 0
    %1296 = vmatprep.subr.mxu0 0.0
    %1297 = vmatpush1.xpose.msra.mxu0 0.0
    %1298 = vmatprep.subr.mxu0 0.0
    %1299 = vmatpush1.xpose.msra.mxu0 0.0
    %1300 = vmatprep.subr.mxu0 0.0
    %1301 = vmatpush1.xpose.msra.mxu0 0.0
    %1302 = vmatprep.subr.mxu0 0.0
    %1303 = vmatpush1.xpose.msra.mxu0 0.0
    %1304 = vmatprep.subr.mxu0 0.0
    %1305 = vmatpush1.xpose.msra.mxu0 0.0
    %1306 = vmatprep.subr.mxu0 0.0
    %1307 = vmatpush1.xpose.msra.mxu0 0.0
    %1308 = vmatprep.subr.mxu0 0.0
    %1309 = vmatpush1.xpose.msra.mxu0 0.0
    %1310 = vmatprep.subr.mxu0 0.0
    %1311 = vmatpush1.xpose.msra.mxu0 0.0
    %1312 = vmatprep.subr.mxu0 0.0
    %1313 = vmatpush1.xpose.msra.mxu0 0.0
    %1314 = vmatprep.subr.mxu0 0.0
    %1315 = vmatpush1.xpose.msra.mxu0 0.0
    %1316 = vmatprep.subr.mxu0 0.0
    %1317 = vmatpush1.xpose.msra.mxu0 0.0
    %1318 = vmatprep.subr.mxu0 0.0
    %1319 = vmatpush1.xpose.msra.mxu0 0.0
    %1320 = vmatprep.subr.mxu0 0.0
    %1321 = vmatpush1.xpose.msra.mxu0 0.0
    %1322 = vmatprep.subr.mxu0 0.0
    %1323 = vmatpush1.xpose.msra.mxu0 0.0
    %1324 = vmatprep.subr.mxu0 0.0
    %1325 = vmatpush1.xpose.msra.mxu0 0.0
    %1326 = vmatprep.subr.mxu0 0.0
    %1327 = vmatpush1.xpose.msra.mxu0 %v1294
    %1328 = vmatprep.subr.mxu0 0.0
    %1329 = vmatpush2.xpose.msra.mxu0 0.0
    %1330 = vmatprep.subr.mxu0 0.0
    %1331 = vmatpush2.xpose.msra.mxu0 0.0
    %1332 = vmatprep.subr.mxu0 0.0
    %1333 = vmatpush2.xpose.msra.mxu0 0.0
    %1334 = vmatprep.subr.mxu0 0.0
    %1335 = vmatpush2.xpose.msra.mxu0 0.0
    %1336 = vmatprep.subr.mxu0 0.0
    %1337 = vmatpush2.xpose.msra.mxu0 0.0
    %1338 = vmatprep.subr.mxu0 0.0
    %1339 = vmatpush2.xpose.msra.mxu0 0.0
    %1340 = vmatprep.subr.mxu0 0.0
    %1341 = vmatpush2.xpose.msra.mxu0 0.0
    %1342 = vmatprep.subr.mxu0 0.0
    %1343 = vmatpush2.xpose.msra.mxu0 0.0
    %1344 = vmatprep.subr.mxu0 0.0
    %1345 = vmatpush2.xpose.msra.mxu0 0.0
    %1346 = vmatprep.subr.mxu0 0.0
    %1347 = vmatpush2.xpose.msra.mxu0 0.0
    %1348 = vmatprep.subr.mxu0 0.0
    %1349 = vmatpush2.xpose.msra.mxu0 0.0
    %1350 = vmatprep.subr.mxu0 0.0
    %1351 = vmatpush2.xpose.msra.mxu0 0.0
    %1352 = vmatprep.subr.mxu0 0.0
    %1353 = vmatpush2.xpose.msra.mxu0 0.0
    %1354 = vmatprep.subr.mxu0 0.0
    %1355 = vmatpush2.xpose.msra.mxu0 0.0
    %1356 = vmatprep.subr.mxu0 0.0
    %1357 = vmatpush2.xpose.msra.mxu0 0.0
    %1358 = vmatprep.subr.mxu0 0.0
    %1359 = vmatpush2.xpose.msra.mxu0 0.0
    %1360 = vmatprep.mubr.f32.mxu0 0.0
    %1361 = vmatmul.mubr.f32.gmra.mxu0 %v1292
    %v1362 = vpop.f32.mrf.mxu0
    %v1363 = vadd.f32 %v224, %v1362
    %v1364 = vpop.f32.mrf.mxu0
    %1365 = vdwg.mxu0
    %v1366 = vsel %vm228, %v1285, -inf
    %1367 = vmax.xlane.f32.xlu0 %v1366
    %v1368 = vpop.xlane.xlu0 %1367
    %v1369 = vsel %vm228, %v1363, -inf
    %1370 = vmax.xlane.f32.xlu0 %v1369
    %v1371 = vpop.xlane.xlu0 %1370
    %v1372 = vsub.f32 %v1285, %v1368
    %v1373 = vsub.f32 %v1363, %v1371
    %v1374 = vmul.f32 %v1372, 1.442695
    %v1375 = vpow.pop %v1374
    %v1376 = vmul.f32 %v1373, 1.442695
    %v1377 = vpow.pop %v1376
    %v1378 = vsel %vm228, %v1375, 0.0
    %1379 = vadd.xlane.f32.xlu0 %v1378
    %v1380 = vpop.xlane.xlu0 %1379
    %v1381 = vsel %vm228, %v1377, 0.0
    %1382 = vadd.xlane.f32.xlu0 %v1381
    %v1383 = vpop.xlane.xlu0 %1382
    %v1384 = vrcp.pop %v1380
    %v1385 = vrcp.pop %v1383
    %v1386 = vmul.f32 %v1375, %v1384
    %v1387 = vmul.f32 %v1377, %v1385
    %1388 = vrot.lane.b32.xlu0 %v185, 104
    %v1389 = vpop.permute.xlu0 %1388
    %v1392 = vsel %vm228, %v1386, 0
    %1394 = vmatprep.subr.mxu0 0.0
    %1395 = vmatpush1.msra.mxu0 0.0
    %1396 = vmatprep.subr.mxu0 0.0
    %1397 = vmatpush1.msra.mxu0 0.0
    %1398 = vmatprep.subr.mxu0 0.0
    %1399 = vmatpush1.msra.mxu0 0.0
    %1400 = vmatprep.subr.mxu0 0.0
    %1401 = vmatpush1.msra.mxu0 0.0
    %1402 = vmatprep.subr.mxu0 0.0
    %1403 = vmatpush1.msra.mxu0 0.0
    %1404 = vmatprep.subr.mxu0 0.0
    %1405 = vmatpush1.msra.mxu0 0.0
    %1406 = vmatprep.subr.mxu0 0.0
    %1407 = vmatpush1.msra.mxu0 0.0
    %1408 = vmatprep.subr.mxu0 0.0
    %1409 = vmatpush1.msra.mxu0 0.0
    %1410 = vmatprep.subr.mxu0 0.0
    %1411 = vmatpush1.msra.mxu0 0.0
    %1412 = vmatprep.subr.mxu0 0.0
    %1413 = vmatpush1.msra.mxu0 0.0
    %1414 = vmatprep.subr.mxu0 0.0
    %1415 = vmatpush1.msra.mxu0 0.0
    %1416 = vmatprep.subr.mxu0 0.0
    %1417 = vmatpush1.msra.mxu0 0.0
    %1418 = vmatprep.subr.mxu0 0.0
    %1419 = vmatpush1.msra.mxu0 0.0
    %1420 = vmatprep.subr.mxu0 0.0
    %1421 = vmatpush1.msra.mxu0 0.0
    %1422 = vmatprep.subr.mxu0 0.0
    %1423 = vmatpush1.msra.mxu0 0.0
    %1424 = vmatprep.subr.mxu0 0.0
    %1425 = vmatpush1.msra.mxu0 %v1389
    %1426 = vmatprep.subr.mxu0 0.0
    %1427 = vmatpush2.msra.mxu0 0.0
    %1428 = vmatprep.subr.mxu0 0.0
    %1429 = vmatpush2.msra.mxu0 0.0
    %1430 = vmatprep.subr.mxu0 0.0
    %1431 = vmatpush2.msra.mxu0 0.0
    %1432 = vmatprep.subr.mxu0 0.0
    %1433 = vmatpush2.msra.mxu0 0.0
    %1434 = vmatprep.subr.mxu0 0.0
    %1435 = vmatpush2.msra.mxu0 0.0
    %1436 = vmatprep.subr.mxu0 0.0
    %1437 = vmatpush2.msra.mxu0 0.0
    %1438 = vmatprep.subr.mxu0 0.0
    %1439 = vmatpush2.msra.mxu0 0.0
    %1440 = vmatprep.subr.mxu0 0.0
    %1441 = vmatpush2.msra.mxu0 0.0
    %1442 = vmatprep.subr.mxu0 0.0
    %1443 = vmatpush2.msra.mxu0 0.0
    %1444 = vmatprep.subr.mxu0 0.0
    %1445 = vmatpush2.msra.mxu0 0.0
    %1446 = vmatprep.subr.mxu0 0.0
    %1447 = vmatpush2.msra.mxu0 0.0
    %1448 = vmatprep.subr.mxu0 0.0
    %1449 = vmatpush2.msra.mxu0 0.0
    %1450 = vmatprep.subr.mxu0 0.0
    %1451 = vmatpush2.msra.mxu0 0.0
    %1452 = vmatprep.subr.mxu0 0.0
    %1453 = vmatpush2.msra.mxu0 0.0
    %1454 = vmatprep.subr.mxu0 0.0
    %1455 = vmatpush2.msra.mxu0 0.0
    %1456 = vmatprep.subr.mxu0 0.0
    %1457 = vmatpush2.msra.mxu0 0.0
    %1458 = vmatprep.mubr.f32.mxu0 0.0
    %1459 = vmatmul.mubr.f32.gmra.mxu0 %v1392
    %v1460 = vpop.f32.mrf.mxu0
    %v1461 = vadd.f32 0.0, %v1460
    %v1462 = vpop.f32.mrf.mxu0
    %1463 = vdwg.mxu0
    %1464 = vrot.lane.b32.xlu0 %v191, 104
    %v1465 = vpop.permute.xlu0 %1464
    %v1468 = vsel %vm228, %v1387, 0
    %1470 = vmatprep.subr.mxu0 0.0
    %1471 = vmatpush1.msra.mxu0 0.0
    %1472 = vmatprep.subr.mxu0 0.0
    %1473 = vmatpush1.msra.mxu0 0.0
    %1474 = vmatprep.subr.mxu0 0.0
    %1475 = vmatpush1.msra.mxu0 0.0
    %1476 = vmatprep.subr.mxu0 0.0
    %1477 = vmatpush1.msra.mxu0 0.0
    %1478 = vmatprep.subr.mxu0 0.0
    %1479 = vmatpush1.msra.mxu0 0.0
    %1480 = vmatprep.subr.mxu0 0.0
    %1481 = vmatpush1.msra.mxu0 0.0
    %1482 = vmatprep.subr.mxu0 0.0
    %1483 = vmatpush1.msra.mxu0 0.0
    %1484 = vmatprep.subr.mxu0 0.0
    %1485 = vmatpush1.msra.mxu0 0.0
    %1486 = vmatprep.subr.mxu0 0.0
    %1487 = vmatpush1.msra.mxu0 0.0
    %1488 = vmatprep.subr.mxu0 0.0
    %1489 = vmatpush1.msra.mxu0 0.0
    %1490 = vmatprep.subr.mxu0 0.0
    %1491 = vmatpush1.msra.mxu0 0.0
    %1492 = vmatprep.subr.mxu0 0.0
    %1493 = vmatpush1.msra.mxu0 0.0
    %1494 = vmatprep.subr.mxu0 0.0
    %1495 = vmatpush1.msra.mxu0 0.0
    %1496 = vmatprep.subr.mxu0 0.0
    %1497 = vmatpush1.msra.mxu0 0.0
    %1498 = vmatprep.subr.mxu0 0.0
    %1499 = vmatpush1.msra.mxu0 0.0
    %1500 = vmatprep.subr.mxu0 0.0
    %1501 = vmatpush1.msra.mxu0 %v1465
    %1502 = vmatprep.subr.mxu0 0.0
    %1503 = vmatpush2.msra.mxu0 0.0
    %1504 = vmatprep.subr.mxu0 0.0
    %1505 = vmatpush2.msra.mxu0 0.0
    %1506 = vmatprep.subr.mxu0 0.0
    %1507 = vmatpush2.msra.mxu0 0.0
    %1508 = vmatprep.subr.mxu0 0.0
    %1509 = vmatpush2.msra.mxu0 0.0
    %1510 = vmatprep.subr.mxu0 0.0
    %1511 = vmatpush2.msra.mxu0 0.0
    %1512 = vmatprep.subr.mxu0 0.0
    %1513 = vmatpush2.msra.mxu0 0.0
    %1514 = vmatprep.subr.mxu0 0.0
    %1515 = vmatpush2.msra.mxu0 0.0
    %1516 = vmatprep.subr.mxu0 0.0
    %1517 = vmatpush2.msra.mxu0 0.0
    %1518 = vmatprep.subr.mxu0 0.0
    %1519 = vmatpush2.msra.mxu0 0.0
    %1520 = vmatprep.subr.mxu0 0.0
    %1521 = vmatpush2.msra.mxu0 0.0
    %1522 = vmatprep.subr.mxu0 0.0
    %1523 = vmatpush2.msra.mxu0 0.0
    %1524 = vmatprep.subr.mxu0 0.0
    %1525 = vmatpush2.msra.mxu0 0.0
    %1526 = vmatprep.subr.mxu0 0.0
    %1527 = vmatpush2.msra.mxu0 0.0
    %1528 = vmatprep.subr.mxu0 0.0
    %1529 = vmatpush2.msra.mxu0 0.0
    %1530 = vmatprep.subr.mxu0 0.0
    %1531 = vmatpush2.msra.mxu0 0.0
    %1532 = vmatprep.subr.mxu0 0.0
    %1533 = vmatpush2.msra.mxu0 0.0
    %1534 = vmatprep.mubr.f32.mxu0 0.0
    %1535 = vmatmul.mubr.f32.gmra.mxu0 %v1468
    %v1536 = vpop.f32.mrf.mxu0
    %v1537 = vadd.f32 0.0, %v1536
    %v1538 = vpop.f32.mrf.mxu0
    %1539 = vdwg.mxu0
    %1542 = vrot.lane.b32.xlu0 %v800, 8
    %v1543 = vpop.permute.xlu0 %1542
    %1544 = vrot.lane.b32.xlu0 %v877, 8
    %v1545 = vpop.permute.xlu0 %1544
    %1550 = vrot.lane.b32.xlu0 %v1131, 16
    %v1551 = vpop.permute.xlu0 %1550
    %1552 = vrot.lane.b32.xlu0 %v1207, 16
    %v1553 = vpop.permute.xlu0 %1552
    %1558 = vrot.lane.b32.xlu0 %v1461, 24
    %v1559 = vpop.permute.xlu0 %1558
    %1560 = vrot.lane.b32.xlu0 %v1537, 24
    %v1561 = vpop.permute.xlu0 %1560
    %v1564 = vsel %vm228, %v472, %v1543
    %v1565 = vsel %vm228, %v545, %v1545
    %vm1566 = vcmask 130048
    %v1567 = vsel %vm1566, %v1564, %v1551
    %v1568 = vsel %vm1566, %v1565, %v1553
    %vm1569 = vcmask 195584
    %v1570 = vsel %vm1569, %v1567, %v1559
    %v1571 = vsel %vm1569, %v1568, %v1561
    %v1572 = vld [vmem:[%s2] sm:$0xff]
    %v1573 = vld [vmem:[%s2 + $0x8] sm:$0xff]
    %v1574 = vld [vmem:[%s2 + $0x10] sm:$0xff]
    %v1575 = vld [vmem:[%s2 + $0x18] sm:$0xff]
    %v1577 = vsel %vm86, %v1570, 0
    %v1580 = vsel %vm86, %v1571, 0
    %1582 = vmatprep.subr.mxu0 0.0
    %1583 = vmatpush1.msra.mxu0 0.0
    %1584 = vmatprep.subr.mxu0 0.0
    %1585 = vmatpush1.msra.mxu0 0.0
    %1586 = vmatprep.subr.mxu0 0.0
    %1587 = vmatpush1.msra.mxu0 0.0
    %1588 = vmatprep.subr.mxu0 0.0
    %1589 = vmatpush1.msra.mxu0 0.0
    %1590 = vmatprep.subr.mxu0 0.0
    %1591 = vmatpush1.msra.mxu0 0.0
    %1592 = vmatprep.subr.mxu0 0.0
    %1593 = vmatpush1.msra.mxu0 0.0
    %1594 = vmatprep.subr.mxu0 0.0
    %1595 = vmatpush1.msra.mxu0 0.0
    %1596 = vmatprep.subr.mxu0 0.0
    %1597 = vmatpush1.msra.mxu0 0.0
    %1598 = vmatprep.subr.mxu0 0.0
    %1599 = vmatpush1.msra.mxu0 0.0
    %1600 = vmatprep.subr.mxu0 0.0
    %1601 = vmatpush1.msra.mxu0 0.0
    %1602 = vmatprep.subr.mxu0 0.0
    %1603 = vmatpush1.msra.mxu0 0.0
    %1604 = vmatprep.subr.mxu0 0.0
    %1605 = vmatpush1.msra.mxu0 0.0
    %1606 = vmatprep.subr.mxu0 0.0
    %1607 = vmatpush1.msra.mxu0 %v1575
    %1608 = vmatprep.subr.mxu0 0.0
    %1609 = vmatpush1.msra.mxu0 %v1574
    %1610 = vmatprep.subr.mxu0 0.0
    %1611 = vmatpush1.msra.mxu0 %v1573
    %1612 = vmatprep.subr.mxu0 0.0
    %1613 = vmatpush1.msra.mxu0 %v1572
    %1614 = vmatprep.subr.mxu0 0.0
    %1615 = vmatpush2.msra.mxu0 0.0
    %1616 = vmatprep.subr.mxu0 0.0
    %1617 = vmatpush2.msra.mxu0 0.0
    %1618 = vmatprep.subr.mxu0 0.0
    %1619 = vmatpush2.msra.mxu0 0.0
    %1620 = vmatprep.subr.mxu0 0.0
    %1621 = vmatpush2.msra.mxu0 0.0
    %1622 = vmatprep.subr.mxu0 0.0
    %1623 = vmatpush2.msra.mxu0 0.0
    %1624 = vmatprep.subr.mxu0 0.0
    %1625 = vmatpush2.msra.mxu0 0.0
    %1626 = vmatprep.subr.mxu0 0.0
    %1627 = vmatpush2.msra.mxu0 0.0
    %1628 = vmatprep.subr.mxu0 0.0
    %1629 = vmatpush2.msra.mxu0 0.0
    %1630 = vmatprep.subr.mxu0 0.0
    %1631 = vmatpush2.msra.mxu0 0.0
    %1632 = vmatprep.subr.mxu0 0.0
    %1633 = vmatpush2.msra.mxu0 0.0
    %1634 = vmatprep.subr.mxu0 0.0
    %1635 = vmatpush2.msra.mxu0 0.0
    %1636 = vmatprep.subr.mxu0 0.0
    %1637 = vmatpush2.msra.mxu0 0.0
    %1638 = vmatprep.subr.mxu0 0.0
    %1639 = vmatpush2.msra.mxu0 0.0
    %1640 = vmatprep.subr.mxu0 0.0
    %1641 = vmatpush2.msra.mxu0 0.0
    %1642 = vmatprep.subr.mxu0 0.0
    %1643 = vmatpush2.msra.mxu0 0.0
    %1644 = vmatprep.subr.mxu0 0.0
    %1645 = vmatpush2.msra.mxu0 0.0
    %1646 = vmatprep.mubr.f32.mxu0 0.0
    %1647 = vmatmul.mubr.f32.gmra.mxu0 %v1577
    %v1648 = vpop.f32.mrf.mxu0
    %v1649 = vadd.f32 0.0, %v1648
    %v1650 = vpop.f32.mrf.mxu0
    %1651 = vmatprep.mubr.f32.mxu0 0.0
    %1652 = vmatmul.mubr.f32.gmra.mxu0 %v1580
    %v1653 = vpop.f32.mrf.mxu0
    %v1654 = vadd.f32 0.0, %v1653
    %v1655 = vpop.f32.mrf.mxu0
    %1656 = vdwg.mxu0
    %v1657 = vadd.f32 %v82, %v1649
    %v1658 = vadd.f32 %v83, %v1654
    %v1659 = vmul.f32 %v1657, %v1657
    %v1660 = vmul.f32 %v1658, %v1658
    %v1661 = vsel %vm86, %v1659, 0.0
    %1662 = vadd.xlane.f32.xlu0 %v1661
    %v1663 = vpop.xlane.xlu0 %1662
    %v1664 = vsel %vm86, %v1660, 0.0
    %1665 = vadd.xlane.f32.xlu0 %v1664
    %v1666 = vpop.xlane.xlu0 %1665
    %v1667 = vmul.f32 %v1663, %v93
    %v1668 = vmul.f32 %v1666, %v93
    %v1669 = vadd.f32 %v1667, 1e-06
    %v1670 = vadd.f32 %v1668, 1e-06
    %v1671 = vrsqrt.pop %v1669
    %v1672 = vrsqrt.pop %v1670
    %v1673 = vmul.f32 %v1657, %v1671
    %v1674 = vmul.f32 %v1658, %v1672
    %v1675 = vld [vmem:[#allocation5] sm:$0xff]
    %v1676 = vld [vmem:[#allocation5 + $0x8] sm:$0xff]
    %v1677 = vld [vmem:[#allocation5 + $0x10] sm:$0xff]
    %v1678 = vld [vmem:[#allocation5 + $0x18] sm:$0xff]
    %v1680 = vsel %vm86, %v1673, 0
    %v1683 = vsel %vm86, %v1674, 0
    %1685 = vmatprep.subr.mxu0 0.0
    %1686 = vmatpush1.msra.mxu0 0.0
    %1687 = vmatprep.subr.mxu0 0.0
    %1688 = vmatpush1.msra.mxu0 0.0
    %1689 = vmatprep.subr.mxu0 0.0
    %1690 = vmatpush1.msra.mxu0 0.0
    %1691 = vmatprep.subr.mxu0 0.0
    %1692 = vmatpush1.msra.mxu0 0.0
    %1693 = vmatprep.subr.mxu0 0.0
    %1694 = vmatpush1.msra.mxu0 0.0
    %1695 = vmatprep.subr.mxu0 0.0
    %1696 = vmatpush1.msra.mxu0 0.0
    %1697 = vmatprep.subr.mxu0 0.0
    %1698 = vmatpush1.msra.mxu0 0.0
    %1699 = vmatprep.subr.mxu0 0.0
    %1700 = vmatpush1.msra.mxu0 0.0
    %1701 = vmatprep.subr.mxu0 0.0
    %1702 = vmatpush1.msra.mxu0 0.0
    %1703 = vmatprep.subr.mxu0 0.0
    %1704 = vmatpush1.msra.mxu0 0.0
    %1705 = vmatprep.subr.mxu0 0.0
    %1706 = vmatpush1.msra.mxu0 0.0
    %1707 = vmatprep.subr.mxu0 0.0
    %1708 = vmatpush1.msra.mxu0 0.0
    %1709 = vmatprep.subr.mxu0 0.0
    %1710 = vmatpush1.msra.mxu0 %v1678
    %1711 = vmatprep.subr.mxu0 0.0
    %1712 = vmatpush1.msra.mxu0 %v1677
    %1713 = vmatprep.subr.mxu0 0.0
    %1714 = vmatpush1.msra.mxu0 %v1676
    %1715 = vmatprep.subr.mxu0 0.0
    %1716 = vmatpush1.msra.mxu0 %v1675
    %1717 = vmatprep.subr.mxu0 0.0
    %1718 = vmatpush2.msra.mxu0 0.0
    %1719 = vmatprep.subr.mxu0 0.0
    %1720 = vmatpush2.msra.mxu0 0.0
    %1721 = vmatprep.subr.mxu0 0.0
    %1722 = vmatpush2.msra.mxu0 0.0
    %1723 = vmatprep.subr.mxu0 0.0
    %1724 = vmatpush2.msra.mxu0 0.0
    %1725 = vmatprep.subr.mxu0 0.0
    %1726 = vmatpush2.msra.mxu0 0.0
    %1727 = vmatprep.subr.mxu0 0.0
    %1728 = vmatpush2.msra.mxu0 0.0
    %1729 = vmatprep.subr.mxu0 0.0
    %1730 = vmatpush2.msra.mxu0 0.0
    %1731 = vmatprep.subr.mxu0 0.0
    %1732 = vmatpush2.msra.mxu0 0.0
    %1733 = vmatprep.subr.mxu0 0.0
    %1734 = vmatpush2.msra.mxu0 0.0
    %1735 = vmatprep.subr.mxu0 0.0
    %1736 = vmatpush2.msra.mxu0 0.0
    %1737 = vmatprep.subr.mxu0 0.0
    %1738 = vmatpush2.msra.mxu0 0.0
    %1739 = vmatprep.subr.mxu0 0.0
    %1740 = vmatpush2.msra.mxu0 0.0
    %1741 = vmatprep.subr.mxu0 0.0
    %1742 = vmatpush2.msra.mxu0 0.0
    %1743 = vmatprep.subr.mxu0 0.0
    %1744 = vmatpush2.msra.mxu0 0.0
    %1745 = vmatprep.subr.mxu0 0.0
    %1746 = vmatpush2.msra.mxu0 0.0
    %1747 = vmatprep.subr.mxu0 0.0
    %1748 = vmatpush2.msra.mxu0 0.0
    %1749 = vmatprep.mubr.f32.mxu0 0.0
    %1750 = vmatmul.mubr.f32.gmra.mxu0 %v1680
    %v1751 = vpop.f32.mrf.mxu0
    %v1752 = vadd.f32 0.0, %v1751
    %v1753 = vpop.f32.mrf.mxu0
    %1754 = vmatprep.mubr.f32.mxu0 0.0
    %1755 = vmatmul.mubr.f32.gmra.mxu0 %v1683
    %v1756 = vpop.f32.mrf.mxu0
    %v1757 = vadd.f32 0.0, %v1756
    %v1758 = vpop.f32.mrf.mxu0
    %1759 = vdwg.mxu0
    %v1760 = vsub.f32 0.0, %v1752
    %v1761 = vsub.f32 0.0, %v1757
    %v1762 = vmul.f32 %v1760, 1.442695
    %v1763 = vpow.pop %v1762
    %v1764 = vmul.f32 %v1761, 1.442695
    %v1765 = vpow.pop %v1764
    %v1766 = vadd.f32 %v1763, 1.0
    %v1767 = vadd.f32 %v1765, 1.0
    %v1768 = vrcp.pop %v1766
    %v1769 = vrcp.pop %v1767
    %v1770 = vmul.f32 %v1752, %v1768
    %v1771 = vmul.f32 %v1757, %v1769
    %1774 = vrot.lane.b32.xlu0 %v1752, 64
    %v1775 = vpop.permute.xlu0 %1774
    %1776 = vrot.lane.b32.xlu0 %v1757, 64
    %v1777 = vpop.permute.xlu0 %1776
    %v1780 = vmul.f32 %v1770, %v1775
    %v1781 = vmul.f32 %v1771, %v1777
    %v1782 = vld [vmem:[%s4] sm:$0xff]
    %v1783 = vld [vmem:[%s4 + $0x8] sm:$0xff]
    %v1784 = vld [vmem:[%s4 + $0x10] sm:$0xff]
    %v1785 = vld [vmem:[%s4 + $0x18] sm:$0xff]
    %v1786 = vld [vmem:[%s4 + $0x20] sm:$0xff]
    %v1787 = vld [vmem:[%s4 + $0x28] sm:$0xff]
    %v1788 = vld [vmem:[%s4 + $0x30] sm:$0xff]
    %v1789 = vld [vmem:[%s4 + $0x38] sm:$0xff]
    %vm1790 = vcmask 523264
    %v1792 = vsel %vm1790, %v1780, 0
    %v1795 = vsel %vm1790, %v1781, 0
    %1797 = vmatprep.subr.mxu0 0.0
    %1798 = vmatpush1.msra.mxu0 0.0
    %1799 = vmatprep.subr.mxu0 0.0
    %1800 = vmatpush1.msra.mxu0 0.0
    %1801 = vmatprep.subr.mxu0 0.0
    %1802 = vmatpush1.msra.mxu0 0.0
    %1803 = vmatprep.subr.mxu0 0.0
    %1804 = vmatpush1.msra.mxu0 0.0
    %1805 = vmatprep.subr.mxu0 0.0
    %1806 = vmatpush1.msra.mxu0 0.0
    %1807 = vmatprep.subr.mxu0 0.0
    %1808 = vmatpush1.msra.mxu0 0.0
    %1809 = vmatprep.subr.mxu0 0.0
    %1810 = vmatpush1.msra.mxu0 0.0
    %1811 = vmatprep.subr.mxu0 0.0
    %1812 = vmatpush1.msra.mxu0 0.0
    %1813 = vmatprep.subr.mxu0 0.0
    %1814 = vmatpush1.msra.mxu0 %v1789
    %1815 = vmatprep.subr.mxu0 0.0
    %1816 = vmatpush1.msra.mxu0 %v1788
    %1817 = vmatprep.subr.mxu0 0.0
    %1818 = vmatpush1.msra.mxu0 %v1787
    %1819 = vmatprep.subr.mxu0 0.0
    %1820 = vmatpush1.msra.mxu0 %v1786
    %1821 = vmatprep.subr.mxu0 0.0
    %1822 = vmatpush1.msra.mxu0 %v1785
    %1823 = vmatprep.subr.mxu0 0.0
    %1824 = vmatpush1.msra.mxu0 %v1784
    %1825 = vmatprep.subr.mxu0 0.0
    %1826 = vmatpush1.msra.mxu0 %v1783
    %1827 = vmatprep.subr.mxu0 0.0
    %1828 = vmatpush1.msra.mxu0 %v1782
    %1829 = vmatprep.subr.mxu0 0.0
    %1830 = vmatpush2.msra.mxu0 0.0
    %1831 = vmatprep.subr.mxu0 0.0
    %1832 = vmatpush2.msra.mxu0 0.0
    %1833 = vmatprep.subr.mxu0 0.0
    %1834 = vmatpush2.msra.mxu0 0.0
    %1835 = vmatprep.subr.mxu0 0.0
    %1836 = vmatpush2.msra.mxu0 0.0
    %1837 = vmatprep.subr.mxu0 0.0
    %1838 = vmatpush2.msra.mxu0 0.0
    %1839 = vmatprep.subr.mxu0 0.0
    %1840 = vmatpush2.msra.mxu0 0.0
    %1841 = vmatprep.subr.mxu0 0.0
    %1842 = vmatpush2.msra.mxu0 0.0
    %1843 = vmatprep.subr.mxu0 0.0
    %1844 = vmatpush2.msra.mxu0 0.0
    %1845 = vmatprep.subr.mxu0 0.0
    %1846 = vmatpush2.msra.mxu0 0.0
    %1847 = vmatprep.subr.mxu0 0.0
    %1848 = vmatpush2.msra.mxu0 0.0
    %1849 = vmatprep.subr.mxu0 0.0
    %1850 = vmatpush2.msra.mxu0 0.0
    %1851 = vmatprep.subr.mxu0 0.0
    %1852 = vmatpush2.msra.mxu0 0.0
    %1853 = vmatprep.subr.mxu0 0.0
    %1854 = vmatpush2.msra.mxu0 0.0
    %1855 = vmatprep.subr.mxu0 0.0
    %1856 = vmatpush2.msra.mxu0 0.0
    %1857 = vmatprep.subr.mxu0 0.0
    %1858 = vmatpush2.msra.mxu0 0.0
    %1859 = vmatprep.subr.mxu0 0.0
    %1860 = vmatpush2.msra.mxu0 0.0
    %1861 = vmatprep.mubr.f32.mxu0 0.0
    %1862 = vmatmul.mubr.f32.gmra.mxu0 %v1792
    %v1863 = vpop.f32.mrf.mxu0
    %v1864 = vadd.f32 0.0, %v1863
    %v1865 = vpop.f32.mrf.mxu0
    %1866 = vmatprep.mubr.f32.mxu0 0.0
    %1867 = vmatmul.mubr.f32.gmra.mxu0 %v1795
    %v1868 = vpop.f32.mrf.mxu0
    %v1869 = vadd.f32 0.0, %v1868
    %v1870 = vpop.f32.mrf.mxu0
    %1871 = vdwg.mxu0
    %v1872 = vadd.f32 %v1657, %v1864
    %v1873 = vadd.f32 %v1658, %v1869
    %1874 = vst.msk [vmem:[#allocation10] sm:$0xff] %vm86, %v1872
    %1875 = vst.msk [vmem:[#allocation10 + $0x8] sm:$0xff] %vm86, %v1873
    // Predicated region
    $region46: #{tpu_custom_call.1} parent=1 // pred_check
      _
    $region47: #{tpu_custom_call.1} parent=1 // pred_check_branch
      %1877 = sbr.rel (0) target = $region49
    $region48: #{tpu_custom_call.1} parent=1 // pred_region
      %s1879 = ssub.s32 256, 256
      %1880 = vsyncadd [#allocation4], %s1879
      %s1881 = sshll.u32 [#allocation10], 4
      %s1882 = int_to_ptr.vmem [resolvable:$true] %s1881
      %1887 = dma.vmem_to_hbm [thread:$0]  %s1882, 256, %s7, [#allocation4], 128, 128, 8
    $region49: #{tpu_custom_call.1} parent=1 // pred_fallthru
      _
    // Predicated region
    $region50: #{tpu_custom_call.1} parent=1 // pred_check
      _
    $region51: #{tpu_custom_call.1} parent=1 // pred_check_branch
      %1889 = sbr.rel (0) target = $region53
    $region52: #{tpu_custom_call.1} parent=1 // pred_region
      %1890 = dma.done [#allocation4], 256
    $region53: #{tpu_custom_call.1} parent=1 // pred_fallthru
      _
    %1891 = vsyncpa [#allocation3], 1
    %1892 = vsyncpa [#allocation6], 1
    %1893 = vsyncpa [#allocation9], 1
    %1894 = vsyncpa [#allocation4], 1

</llo_original>
